<compile_context>
chip_gen: v7x
topology: tpu7x:2x2x1
jax: 0.10.0
libtpu: 0.0.40
codegen_flags: <defaults>
</compile_context>

<pallas_src>
from functools import partial

import jax
import jax.numpy as jnp
from jax import lax
from jax.experimental import pallas as pl
from jax.experimental.pallas import tpu as pltpu


def _cdist_kernel(xx_ref, yy_ref, x_ref, y_ref, o_ref, *, cross_dtype):
    # xx_ref: (tm, 1)  yy_ref: (1, tn)  x_ref: (tm, D)  y_ref: (tn, D)
    x = x_ref[...]
    y = y_ref[...]
    if cross_dtype is not None:          # optional bf16-into-MXU path (v6e/v7x)
        x = x.astype(cross_dtype)
        y = y.astype(cross_dtype)
    # Contract on the last dim of BOTH operands -> MXU fed directly, no y.T.
    xy = lax.dot_general(
        x, y,
        dimension_numbers=(((1,), (1,)), ((), ())),
        preferred_element_type=jnp.float32,
    )                                     # (tm, tn), f32 accumulate
    d2 = jnp.maximum(xx_ref[...] + yy_ref[...] - 2.0 * xy, 0.0)
    o_ref[...] = jnp.sqrt(d2).astype(o_ref.dtype)


def _round_up(n, m):
    return ((n + m - 1) // m) * m


# Conservative double-buffered VMEM working set for one grid step.
def _workset_bytes(tm, tn, D, in_item, out_item):
    return 2 * ((tm * D + tn * D) * in_item
                + tm * tn * out_item
                + (tm + tn) * 4)


_VMEM_BUDGET = 12 * 1024 * 1024   # stays under the 16 MiB scoped default (v5e)


def _choose_tiles(Nx, Ny, D, in_item, out_item):
    # y (usually the big operand) is streamed along the inner grid axis; the
    # x tile stays VMEM-resident across it, so every extra x tile means one
    # more full pass over y in HBM.  Grow tm as far as the budget allows.
    tn = min(256, _round_up(Ny, 128))
    tm_cap = min(1024, _round_up(Nx, 128))
    tm = tm_cap
    while tm > 128 and _workset_bytes(tm, tn, D, in_item, out_item) > _VMEM_BUDGET:
        tm -= 128
    # Last-resort shrink of tn as well (huge D); keeps lane width >= 128.
    while tn > 128 and _workset_bytes(tm, tn, D, in_item, out_item) > _VMEM_BUDGET:
        tn -= 128
    return tm, tn


def cdist_p2(x, y, *, tm=None, tn=None, cross_dtype=None):
    """Pairwise L2 distance: x (B, Nx, D), y (B, Ny, D) -> (B, Nx, Ny)."""
    B, Nx, D = x.shape
    By, Ny, Dy = y.shape
    assert B == By and D == Dy, "batch / feature dims must match"

    out_dtype = x.dtype
    in_item = jnp.dtype(x.dtype).itemsize
    out_item = jnp.dtype(out_dtype).itemsize

    auto_tm, auto_tn = _choose_tiles(Nx, Ny, D, in_item, out_item)
    if tm is None:
        tm = auto_tm
    if tn is None:
        tn = auto_tn
    assert _workset_bytes(tm, tn, D, in_item, out_item) <= _VMEM_BUDGET, (
        "tile config exceeds conservative VMEM budget")
    # TODO(synk): add a K-tiled accumulator path for very large D instead of
    # full-D blocks (not needed for D=384).

    # Pad point axes to tile multiples; padded rows have zero norm, and the
    # padded output rows/cols are sliced off below.
    Nxp = _round_up(Nx, tm)
    Nyp = _round_up(Ny, tn)
    xp = x if Nxp == Nx else jnp.pad(x, ((0, 0), (0, Nxp - Nx), (0, 0)))
    yp = y if Nyp == Ny else jnp.pad(y, ((0, 0), (0, Nyp - Ny), (0, 0)))

    # Precompute squared row norms once (f32) in the wrapper.
    xx = jnp.sum(xp.astype(jnp.float32) ** 2, axis=-1, keepdims=True)   # (B, Nxp, 1)
    yy = jnp.sum(yp.astype(jnp.float32) ** 2, axis=-1)[:, None, :]      # (B, 1, Nyp)

    grid = (B, Nxp // tm, Nyp // tn)

    n_x_tiles = Nxp // tm
    flops = 2 * B * Nxp * Nyp * D + 5 * B * Nxp * Nyp
    bytes_accessed = (xp.size * in_item                    # x read once
                      + n_x_tiles * yp.size * in_item      # y read once per x tile
                      + (xx.size + yy.size) * 4
                      + B * Nxp * Nyp * out_item)          # output written once

    out = pl.pallas_call(
        partial(_cdist_kernel, cross_dtype=cross_dtype),
        out_shape=jax.ShapeDtypeStruct((B, Nxp, Nyp), out_dtype),
        grid_spec=pltpu.PrefetchScalarGridSpec(
            num_scalar_prefetch=0,
            grid=grid,
            in_specs=[
                pl.BlockSpec((pl.Squeezed(), tm, 1), lambda b, i, j: (b, i, 0)),
                pl.BlockSpec((pl.Squeezed(), 1, tn), lambda b, i, j: (b, 0, j)),
                pl.BlockSpec((pl.Squeezed(), tm, D), lambda b, i, j: (b, i, 0)),
                pl.BlockSpec((pl.Squeezed(), tn, D), lambda b, i, j: (b, j, 0)),
            ],
            out_specs=pl.BlockSpec(
                (pl.Squeezed(), tm, tn), lambda b, i, j: (b, i, j)
            ),
        ),
        compiler_params=pltpu.CompilerParams(
            dimension_semantics=("parallel", "parallel", "parallel")
        ),
        cost_estimate=pl.CostEstimate(
            flops=int(flops),
            transcendentals=0,
            bytes_accessed=int(bytes_accessed),
        ),
    )(xx, yy, xp, yp)

    if Nxp != Nx or Nyp != Ny:
        out = out[:, :Nx, :Ny]
    return out


class Cdist:
    """JAX/Pallas equivalent of the PyTorch Cdist module (p=2)."""

    def __call__(self, x, y):
        return cdist_p2(x, y)


if __name__ == "__main__":
    # Small shapes consistent with the module's forward (spec: (1,784,384) x
    # (1,16000,384)); Nx/Ny deliberately NOT tile-aligned to exercise padding.
    B, Nx, Ny, D = 1, 200, 320, 384
    key = jax.random.PRNGKey(0)
    kx, ky = jax.random.split(key)
    x = jax.random.normal(kx, (B, Nx, D), dtype=jnp.float32)
    y = jax.random.normal(ky, (B, Ny, D), dtype=jnp.float32)

    model = Cdist()
    out = jax.block_until_ready(model(x, y))

    # Sanity check vs. a pure-JAX naive reference.
    ref = jnp.sqrt(
        jnp.maximum(
            jnp.sum((x[:, :, None, :] - y[:, None, :, :]) ** 2, axis=-1), 0.0
        )
    )
    assert out.shape == (B, Nx, Ny)
    assert jnp.allclose(out, ref, atol=2e-3, rtol=2e-3)

    print("KERNEL_OK")
</pallas_src>

<mosaic_0001>
module attributes {stable_mosaic.version = 11 : i64} {
  func.func @_cdist_kernel(%arg0: i32, %arg1: i32, %arg2: i32, %arg3: memref<1x256x1xf32, #tpu.memory_space<vmem>>, %arg4: memref<1x1x256xf32, #tpu.memory_space<vmem>>, %arg5: memref<1x256x384xf32, #tpu.memory_space<vmem>>, %arg6: memref<1x256x384xf32, #tpu.memory_space<vmem>>, %arg7: memref<1x256x256xf32, #tpu.memory_space<vmem>>) attributes {dimension_semantics = [#tpu.dimension_semantics<parallel>, #tpu.dimension_semantics<parallel>, #tpu.dimension_semantics<parallel>], iteration_bounds = array<i64: 1, 1, 2>, scalar_prefetch = 0 : i64, scratch_operands = 0 : i64, tpu.core_type = #tpu.core_type<tc>, window_params = [{transform_indices = @transform_0, window_bounds = array<i64: 1, 256, 1>}, {transform_indices = @transform_1, window_bounds = array<i64: 1, 1, 256>}, {transform_indices = @transform_2, window_bounds = array<i64: 1, 256, 384>}, {transform_indices = @transform_3, window_bounds = array<i64: 1, 256, 384>}, {transform_indices = @transform_4, window_bounds = array<i64: 1, 256, 256>}]} {
    %c0 = arith.constant 0 : index
    %c0_0 = arith.constant 0 : index
    %c0_1 = arith.constant 0 : index
    %0 = vector.load %arg5[%c0, %c0_0, %c0_1] : memref<1x256x384xf32, #tpu.memory_space<vmem>>, vector<1x256x384xf32>
    %1 = vector.shape_cast %0 : vector<1x256x384xf32> to vector<256x384xf32>
    %c0_2 = arith.constant 0 : index
    %c0_3 = arith.constant 0 : index
    %c0_4 = arith.constant 0 : index
    %2 = vector.load %arg6[%c0_2, %c0_3, %c0_4] : memref<1x256x384xf32, #tpu.memory_space<vmem>>, vector<1x256x384xf32>
    %3 = vector.shape_cast %2 : vector<1x256x384xf32> to vector<256x384xf32>
    %cst = arith.constant dense<0.000000e+00> : vector<256x256xf32>
    %4 = tpu.matmul %1, %3, %cst {dimension_numbers = #tpu.dot_dimension_numbers<[1], [1], [0], [0], [0, 0, 1, 0], [], []>} : vector<256x384xf32>, vector<256x384xf32>, vector<256x256xf32> -> vector<256x256xf32>
    %c0_5 = arith.constant 0 : index
    %c0_6 = arith.constant 0 : index
    %c0_7 = arith.constant 0 : index
    %5 = vector.load %arg3[%c0_5, %c0_6, %c0_7] : memref<1x256x1xf32, #tpu.memory_space<vmem>>, vector<1x256x1xf32>
    %6 = vector.shape_cast %5 : vector<1x256x1xf32> to vector<256x1xf32>
    %c0_8 = arith.constant 0 : index
    %c0_9 = arith.constant 0 : index
    %c0_10 = arith.constant 0 : index
    %7 = vector.load %arg4[%c0_8, %c0_9, %c0_10] : memref<1x1x256xf32, #tpu.memory_space<vmem>>, vector<1x1x256xf32>
    %8 = vector.shape_cast %7 : vector<1x1x256xf32> to vector<1x256xf32>
    %9 = vector.broadcast %6 : vector<256x1xf32> to vector<256x256xf32>
    %10 = vector.broadcast %8 : vector<1x256xf32> to vector<256x256xf32>
    %11 = arith.addf %9, %10 : vector<256x256xf32>
    %cst_11 = arith.constant 2.000000e+00 : f32
    %12 = vector.broadcast %cst_11 : f32 to vector<256x256xf32>
    %13 = arith.mulf %12, %4 : vector<256x256xf32>
    %14 = arith.subf %11, %13 : vector<256x256xf32>
    %cst_12 = arith.constant 0.000000e+00 : f32
    %15 = vector.broadcast %cst_12 : f32 to vector<256x256xf32>
    %16 = arith.maximumf %14, %15 : vector<256x256xf32>
    %17 = math.sqrt %16 : vector<256x256xf32>
    %c0_13 = arith.constant 0 : index
    %c0_14 = arith.constant 0 : index
    %c0_15 = arith.constant 0 : index
    %18 = vector.load %arg7[%c0_13, %c0_14, %c0_15] : memref<1x256x256xf32, #tpu.memory_space<vmem>>, vector<1x256x256xf32>
    %19 = vector.shape_cast %18 : vector<1x256x256xf32> to vector<256x256xf32>
    %20 = vector.shape_cast %17 : vector<256x256xf32> to vector<1x256x256xf32>
    tpu.vector_store %arg7[%c0_13, %c0_14, %c0_15], %20 {strides = array<i32>} : memref<1x256x256xf32, #tpu.memory_space<vmem>>, vector<1x256x256xf32>,
    return
  }
  func.func @transform_0(%arg0: i32, %arg1: i32, %arg2: i32) -> (i32, i32, i32) {
    %c0_i32 = arith.constant 0 : i32
    %c0_i32_0 = arith.constant 0 : i32
    return %arg0, %arg1, %c0_i32 : i32, i32, i32
  }
  func.func @transform_1(%arg0: i32, %arg1: i32, %arg2: i32) -> (i32, i32, i32) {
    %c0_i32 = arith.constant 0 : i32
    %c0_i32_0 = arith.constant 0 : i32
    return %arg0, %c0_i32, %arg2 : i32, i32, i32
  }
  func.func @transform_2(%arg0: i32, %arg1: i32, %arg2: i32) -> (i32, i32, i32) {
    %c0_i32 = arith.constant 0 : i32
    %c0_i32_0 = arith.constant 0 : i32
    return %arg0, %arg1, %c0_i32 : i32, i32, i32
  }
  func.func @transform_3(%arg0: i32, %arg1: i32, %arg2: i32) -> (i32, i32, i32) {
    %c0_i32 = arith.constant 0 : i32
    %c0_i32_0 = arith.constant 0 : i32
    return %arg0, %arg2, %c0_i32 : i32, i32, i32
  }
  func.func @transform_4(%arg0: i32, %arg1: i32, %arg2: i32) -> (i32, i32, i32) {
    %c0_i32 = arith.constant 0 : i32
    return %arg0, %arg1, %arg2 : i32, i32, i32
  }
}

</mosaic_0001>

<llo_original>
// kernel: tpu_custom_call.1
$region0: #{tpu_custom_call.1}
  #allocation0 [shape = 'u32[]', space=smem, size = 0x4, offset = 0x4, fixed_abs, tag = 'smem constant byte address 0x4 - core index']
  #allocation1 [shape = 'u32[144,128]{1,0:T(1,128)}', space=vmem, size = 0x12000, scoped, tag = 'internal scratch']
  %s0 = inlined_call_operand.vmem [shape: f32[1,256,1], index: 0, kind: input, shape index: {}]
  %s1 = inlined_call_operand.vmem [shape: f32[1,1,512], index: 1, kind: input, shape index: {}]
  %s2 = inlined_call_operand.hbm [shape: f32[1,256,384], index: 2, kind: input, shape index: {}]
  %s3 = inlined_call_operand.hbm [shape: f32[1,512,384], index: 3, kind: input, shape index: {}]
  %s4 = inlined_call_operand.hbm [shape: f32[1,256,512], index: 4, kind: output, shape index: {}]
  %s5 = sld [smem:[#allocation0]]
  $region57: #{tpu_custom_call.1} parent=0
    _
  %s7 = ssub.s32 1, %s5
  %s8 = scalar_select 0, %s7, %s5
  $region1: #{tpu_custom_call.1} parent=0
    #allocation2 [shape = 'u8[393216]{0}', space=vmem, size = 0x60000, scoped, tag = 'input window, operand 2, single buffered']
    #allocation3 [shape = 's32[2]{0}', space=sflag, size = 0x8, scoped, tag = 'scoped memory for tpu_custom_call.1']
    #allocation4 [shape = 's32[2]{0}', space=sflag, size = 0x8, scoped, tag = 'scoped memory for tpu_custom_call.1']
    #allocation5 [shape = 'u8[786432]{0}', space=vmem, size = 0xc0000, scoped, tag = 'input window, operand 3']
    #allocation6 [shape = 's32[2]{0}', space=sflag, size = 0x8, scoped, tag = 'scoped memory for tpu_custom_call.1']
    #allocation7 [shape = 'u8[524288]{0}', space=vmem, size = 0x80000, scoped, tag = 'output window, operand 0']
    %9 = vsyncpa [#allocation3], 0
    %10 = vsyncpa [#allocation6], 0
    %s11 = scalar_lea.sflag [#allocation6], 1
    %12 = vsyncpa %s11, 0
    %13 = vsyncpa [#allocation4], 0
    %s14 = scalar_lea.sflag [#allocation4], 1
    %15 = vsyncpa %s14, 0
    loop: start=0, step=1, limit=4
    $region2: #{tpu_custom_call.1} parent=1 // loop_pre_header
      _
    $region3: #{tpu_custom_call.1} parent=1 // loop_header
      %s17 = sphi 0, %s21
      %p18 = scmp.ge.s32.totalorder %s17, 4
      %s24 = sphi 0, %s43
      %s25 = sphi 0, %s39
      %s26 = sphi 0, %s35
      %s27 = sphi 0, %s24
      %s28 = sphi 0, %s25
      %s29 = sphi 0, %s26
      %s30 = sphi 0, %s27
      %s31 = sphi 0, %s28
      %s32 = sphi 0, %s29
      %s48 = sphi 0, %s50
      %s51 = sphi 0, %s48
      %s52 = sphi 0, %s51
      %s68 = sphi 0, %s52
      %s76 = sphi 0, %s78
      %s79 = sphi 0, %s76
      %s80 = sphi 0, %s79
      %s96 = sphi 0, %s80
      %s104 = sphi 0, %s106
      %s107 = sphi 0, %s104
      %s108 = sphi 0, %s107
      %s124 = sphi 0, %s108
      %s132 = sphi 0, %s134
      %s135 = sphi 0, %s132
      %s136 = sphi 0, %s135
      %s152 = sphi 0, %s136
      %s162 = sphi 0, %s164
      %s165 = sphi 0, %s162
      %s166 = sphi 0, %s165
      %s182 = sphi 0, %s166
    $region4: #{tpu_custom_call.1} parent=1 // loop_header_branch
      %20 = sbr.rel (%p18) target = $region8
    $region5: #{tpu_custom_call.1} parent=1 // loop_body
      %s22 = ssub.s32 %s17, 1
      %s23 = ssub.s32 %s17, 2
      %s33 = sadd.s32 1, %s26
      %p34 = scmp.ge.s32.totalorder %s33, 2
      %s35 = scalar_select %p34, 0, %s33
      %s36 = sadd.s32 1, %s25
      %s37 = scalar_select %p34, %s36, %s25
      %p38 = scmp.ge.s32.totalorder %s37, 1
      %s39 = scalar_select %p38, 0, %s37
      %s40 = sadd.s32 1, %s24
      %s41 = scalar_select %p38, %s40, %s24
      %p42 = scmp.ge.s32.totalorder %s41, 1
      %s43 = scalar_select %p42, 0, %s41
      %s44 = ssub.s32 %s24, %s43
      %s45 = ssub.s32 %s25, %s39
      %s46 = sor.u32 %s44, %s45
      %p47 = scmp.eq.s32.totalorder %s46, 0
      %s49 = sadd.s32 %s48, 1
      %s50 = scalar_select %p47, %s48, %s49
      %p53 = pneg %p47
      %p54 = scmp.eq.s32.totalorder %s17, 1
      %p55 = por %p53, %p54
      %p56 = scmp.ne.s32.totalorder %s48, %s51
      %p57 = scmp.eq.s32.totalorder %s17, 0
      %p58 = por %p56, %p57
      %p59 = scmp.ne.s32.totalorder %s48, %s51
      %p60 = scmp.eq.s32.totalorder %s22, 1
      %p61 = por %p59, %p60
      %p62 = scmp.ne.s32.totalorder %s51, %s52
      %p63 = scmp.eq.s32.totalorder %s22, 0
      %p64 = por %p62, %p63
      %p65 = scmp.ne.s32.totalorder %s51, %s52
      %p66 = scmp.eq.s32.totalorder %s23, 1
      %p67 = por %p65, %p66
      %p69 = scmp.ne.s32.totalorder %s52, %s68
      %p70 = scmp.eq.s32.totalorder %s23, 0
      %p71 = por %p69, %p70
      %s72 = ssub.s32 %s24, %s43
      %s73 = ssub.s32 %s26, %s35
      %s74 = sor.u32 %s72, %s73
      %p75 = scmp.eq.s32.totalorder %s74, 0
      %s77 = sadd.s32 %s76, 1
      %s78 = scalar_select %p75, %s76, %s77
      %p81 = pneg %p75
      %p82 = scmp.eq.s32.totalorder %s17, 1
      %p83 = por %p81, %p82
      %p84 = scmp.ne.s32.totalorder %s76, %s79
      %p85 = scmp.eq.s32.totalorder %s17, 0
      %p86 = por %p84, %p85
      %p87 = scmp.ne.s32.totalorder %s76, %s79
      %p88 = scmp.eq.s32.totalorder %s22, 1
      %p89 = por %p87, %p88
      %p90 = scmp.ne.s32.totalorder %s79, %s80
      %p91 = scmp.eq.s32.totalorder %s22, 0
      %p92 = por %p90, %p91
      %p93 = scmp.ne.s32.totalorder %s79, %s80
      %p94 = scmp.eq.s32.totalorder %s23, 1
      %p95 = por %p93, %p94
      %p97 = scmp.ne.s32.totalorder %s80, %s96
      %p98 = scmp.eq.s32.totalorder %s23, 0
      %p99 = por %p97, %p98
      %s100 = ssub.s32 %s24, %s43
      %s101 = ssub.s32 %s25, %s39
      %s102 = sor.u32 %s100, %s101
      %p103 = scmp.eq.s32.totalorder %s102, 0
      %s105 = sadd.s32 %s104, 1
      %s106 = scalar_select %p103, %s104, %s105
      %p109 = pneg %p103
      %p110 = scmp.eq.s32.totalorder %s17, 1
      %p111 = por %p109, %p110
      %p112 = scmp.ne.s32.totalorder %s104, %s107
      %p113 = scmp.eq.s32.totalorder %s17, 0
      %p114 = por %p112, %p113
      %p115 = scmp.ne.s32.totalorder %s104, %s107
      %p116 = scmp.eq.s32.totalorder %s22, 1
      %p117 = por %p115, %p116
      %p118 = scmp.ne.s32.totalorder %s107, %s108
      %p119 = scmp.eq.s32.totalorder %s22, 0
      %p120 = por %p118, %p119
      %p121 = scmp.ne.s32.totalorder %s107, %s108
      %p122 = scmp.eq.s32.totalorder %s23, 1
      %p123 = por %p121, %p122
      %p125 = scmp.ne.s32.totalorder %s108, %s124
      %p126 = scmp.eq.s32.totalorder %s23, 0
      %p127 = por %p125, %p126
      %s128 = ssub.s32 %s24, %s43
      %s129 = ssub.s32 %s26, %s35
      %s130 = sor.u32 %s128, %s129
      %p131 = scmp.eq.s32.totalorder %s130, 0
      %s133 = sadd.s32 %s132, 1
      %s134 = scalar_select %p131, %s132, %s133
      %p137 = pneg %p131
      %p138 = scmp.eq.s32.totalorder %s17, 1
      %p139 = por %p137, %p138
      %p140 = scmp.ne.s32.totalorder %s132, %s135
      %p141 = scmp.eq.s32.totalorder %s17, 0
      %p142 = por %p140, %p141
      %p143 = scmp.ne.s32.totalorder %s132, %s135
      %p144 = scmp.eq.s32.totalorder %s22, 1
      %p145 = por %p143, %p144
      %p146 = scmp.ne.s32.totalorder %s135, %s136
      %p147 = scmp.eq.s32.totalorder %s22, 0
      %p148 = por %p146, %p147
      %p149 = scmp.ne.s32.totalorder %s135, %s136
      %p150 = scmp.eq.s32.totalorder %s23, 1
      %p151 = por %p149, %p150
      %p153 = scmp.ne.s32.totalorder %s136, %s152
      %p154 = scmp.eq.s32.totalorder %s23, 0
      %p155 = por %p153, %p154
      %s156 = ssub.s32 %s24, %s43
      %s157 = ssub.s32 %s25, %s39
      %s158 = sor.u32 %s156, %s157
      %s159 = ssub.s32 %s26, %s35
      %s160 = sor.u32 %s158, %s159
      %p161 = scmp.eq.s32.totalorder %s160, 0
      %s163 = sadd.s32 %s162, 1
      %s164 = scalar_select %p161, %s162, %s163
      %p167 = pneg %p161
      %p168 = scmp.eq.s32.totalorder %s17, 1
      %p169 = por %p167, %p168
      %p170 = scmp.ne.s32.totalorder %s162, %s165
      %p171 = scmp.eq.s32.totalorder %s17, 0
      %p172 = por %p170, %p171
      %p173 = scmp.ne.s32.totalorder %s162, %s165
      %p174 = scmp.eq.s32.totalorder %s22, 1
      %p175 = por %p173, %p174
      %p176 = scmp.ne.s32.totalorder %s165, %s166
      %p177 = scmp.eq.s32.totalorder %s22, 0
      %p178 = por %p176, %p177
      %p179 = scmp.ne.s32.totalorder %s165, %s166
      %p180 = scmp.eq.s32.totalorder %s23, 1
      %p181 = por %p179, %p180
      %p183 = scmp.ne.s32.totalorder %s166, %s182
      %p184 = scmp.eq.s32.totalorder %s23, 0
      %p185 = por %p183, %p184
      %p186 = scmp.le.s32.totalorder 1, %s17
      %p187 = scmp.lt.s32.totalorder %s17, 3
      %p188 = pnand %p186, %p187
      %p189 = pneg %p188
      // Predicated region
      $region9: #{tpu_custom_call.1} parent=5 // pred_check
        _
      $region10: #{tpu_custom_call.1} parent=5 // pred_check_branch
        %191 = sbr.rel (%p188) target = $region12
      $region11: #{tpu_custom_call.1} parent=5 // pred_region
        %s192 = ssub.s32 %s17, 1
        // Predicated region
        $region13: #{tpu_custom_call.1} parent=11 // pred_check
          %p193 = pneg %p64
        $region14: #{tpu_custom_call.1} parent=11 // pred_check_branch
          %195 = sbr.rel (%p193) target = $region16
        $region15: #{tpu_custom_call.1} parent=11 // pred_region
          %s196 = smul.u32 32, %s28
          %p197 = scmp.lt.s32.totalorder %s27, 0
          %s198 = scalar_select %p197, %s27, 0
          %p199 = scmp.lt.s32.totalorder %s196, 31
          %s200 = scalar_select %p199, %s196, 31
          %s201 = smul.addr %s198, 32
          %s202 = sadd.s32 %s200, %s201
          %s203 = smul.addr %s202, 8
          %s204 = scalar_lea.vmem %s0, %s203
          %s205 = smul.u32 32, %s28
        $region16: #{tpu_custom_call.1} parent=11 // pred_fallthru
          _
        // Predicated region
        $region17: #{tpu_custom_call.1} parent=11 // pred_check
          %p206 = pneg %p120
        $region18: #{tpu_custom_call.1} parent=11 // pred_check_branch
          %208 = sbr.rel (%p206) target = $region20
        $region19: #{tpu_custom_call.1} parent=11 // pred_region
          %s209 = smul.u32 32, %s28
          %s211 = ssub.s32 12288, 12288
          %212 = vsyncadd [#allocation3], %s211
          %s213 = smul.addr %s209, 3
          %s214 = smul.addr %s27, 96
          %s215 = sadd.s32 %s213, %s214
          %s216 = smul.addr %s215, 128
          %s217 = scalar_lea.hbm %s2, %s216
          %s218 = sshll.u32 [#allocation2], 4
          %s219 = int_to_ptr.vmem [resolvable:$true] %s218
          %224 = dma.hbm_to_vmem [thread:$0]  %s217, 12288, %s219, [#allocation3], 384, 384, 24
        $region20: #{tpu_custom_call.1} parent=11 // pred_fallthru
          _
      $region12: #{tpu_custom_call.1} parent=5 // pred_fallthru
        _
      %p225 = scmp.lt.s32.totalorder %s17, 2
      // Predicated region
      $region21: #{tpu_custom_call.1} parent=5 // pred_check
        %p226 = pneg %p225
      $region22: #{tpu_custom_call.1} parent=5 // pred_check_branch
        %228 = sbr.rel (%p226) target = $region24
      $region23: #{tpu_custom_call.1} parent=5 // pred_region
        // Predicated region
        $region25: #{tpu_custom_call.1} parent=23 // pred_check
          %p229 = pneg %p86
        $region26: #{tpu_custom_call.1} parent=23 // pred_check_branch
          %231 = sbr.rel (%p229) target = $region28
        $region27: #{tpu_custom_call.1} parent=23 // pred_region
          %s232 = smul.u32 2, %s26
          %p233 = scmp.lt.s32.totalorder %s24, 0
          %s234 = scalar_select %p233, %s24, 0
          %p235 = scmp.lt.s32.totalorder %s232, 3
          %s236 = scalar_select %p235, %s232, 3
          %s237 = smul.addr %s234, 4
          %s238 = sadd.s32 %s236, %s237
          %s239 = scalar_lea.vmem %s1, %s238
          %s240 = smul.u32 2, %s26
        $region28: #{tpu_custom_call.1} parent=23 // pred_fallthru
          _
        // Predicated region
        $region29: #{tpu_custom_call.1} parent=23 // pred_check
          %p241 = pneg %p142
        $region30: #{tpu_custom_call.1} parent=23 // pred_check_branch
          %243 = sbr.rel (%p241) target = $region32
        $region31: #{tpu_custom_call.1} parent=23 // pred_region
          %s244 = sand.u32 %s132, 1
          %s245 = scalar_lea.sflag [#allocation6], %s244
          %s246 = sand.u32 %s132, 1
          %s247 = smul.addr %s246, 768
          %s248 = scalar_lea.vmem [#allocation5], %s247
          %s249 = smul.u32 32, %s26
          %s251 = ssub.s32 12288, 12288
          %252 = vsyncadd %s245, %s251
          %s253 = smul.addr %s249, 3
          %s254 = smul.addr %s24, 192
          %s255 = sadd.s32 %s253, %s254
          %s256 = smul.addr %s255, 128
          %s257 = scalar_lea.hbm %s3, %s256
          %s258 = sshll.u32 %s248, 4
          %s259 = int_to_ptr.vmem [resolvable:$true] %s258
          %264 = dma.hbm_to_vmem [thread:$0]  %s257, 12288, %s259, %s245, 384, 384, 24
        $region32: #{tpu_custom_call.1} parent=23 // pred_fallthru
          _
      $region24: #{tpu_custom_call.1} parent=5 // pred_fallthru
        _
      %p265 = scmp.le.s32.totalorder 1, %s17
      %p266 = scmp.lt.s32.totalorder %s17, 3
      %p267 = pnand %p265, %p266
      %p268 = pneg %p267
      // Predicated region
      $region33: #{tpu_custom_call.1} parent=5 // pred_check
        _
      $region34: #{tpu_custom_call.1} parent=5 // pred_check_branch
        %270 = sbr.rel (%p267) target = $region36
      $region35: #{tpu_custom_call.1} parent=5 // pred_region
        %s271 = ssub.s32 %s17, 1
        // Predicated region
        $region37: #{tpu_custom_call.1} parent=35 // pred_check
          %p272 = pneg %p120
        $region38: #{tpu_custom_call.1} parent=35 // pred_check_branch
          %274 = sbr.rel (%p272) target = $region40
        $region39: #{tpu_custom_call.1} parent=35 // pred_region
          %275 = dma.done [#allocation3], 12288
        $region40: #{tpu_custom_call.1} parent=35 // pred_fallthru
          _
        %s276 = sand.u32 %s135, 1
        %s277 = scalar_lea.sflag [#allocation6], %s276
        %s278 = sand.u32 %s135, 1
        %s279 = smul.addr %s278, 768
        %s280 = scalar_lea.vmem [#allocation5], %s279
        // Predicated region
        $region41: #{tpu_custom_call.1} parent=35 // pred_check
          %p281 = pneg %p148
        $region42: #{tpu_custom_call.1} parent=35 // pred_check_branch
          %283 = sbr.rel (%p281) target = $region44
        $region43: #{tpu_custom_call.1} parent=35 // pred_region
          %284 = dma.done %s277, 12288
        $region44: #{tpu_custom_call.1} parent=35 // pred_fallthru
          _
        %s285 = smul.u32 32, %s28
        %p286 = scmp.lt.s32.totalorder %s27, 0
        %s287 = scalar_select %p286, %s27, 0
        %p288 = scmp.lt.s32.totalorder %s285, 31
        %s289 = scalar_select %p288, %s285, 31
        %s290 = smul.addr %s287, 32
        %s291 = sadd.s32 %s289, %s290
        %s292 = smul.addr %s291, 8
        %s293 = scalar_lea.vmem %s0, %s292
        %p294 = pneg %p64
        %p295 = pneg %p61
        %s296 = smul.u32 2, %s29
        %p297 = scmp.lt.s32.totalorder %s27, 0
        %s298 = scalar_select %p297, %s27, 0
        %p299 = scmp.lt.s32.totalorder %s296, 3
        %s300 = scalar_select %p299, %s296, 3
        %s301 = smul.addr %s298, 4
        %s302 = sadd.s32 %s300, %s301
        %s303 = scalar_lea.vmem %s1, %s302
        %p304 = pneg %p92
        %p305 = pneg %p89
        %p306 = pneg %p120
        %p307 = pneg %p117
        %s308 = sand.u32 %s135, 1
        %s309 = scalar_lea.sflag [#allocation6], %s308
        %s310 = sand.u32 %s135, 1
        %s311 = smul.addr %s310, 768
        %s312 = scalar_lea.vmem [#allocation5], %s311
        %p313 = pneg %p148
        %p314 = pneg %p145
        %p315 = pneg %p178
        %p316 = pneg %p175
        %s317 = sand.u32 %s165, 1
        %s318 = scalar_lea.sflag [#allocation4], %s317
        %s319 = sand.u32 %s165, 1
        %s320 = smul.addr %s319, 512
        %s321 = scalar_lea.vmem [#allocation7], %s320
        %s322 = smul.u32 32, %s28
        %p323 = scmp.lt.s32.totalorder %s27, 0
        %s324 = scalar_select %p323, %s27, 0
        %p325 = scmp.lt.s32.totalorder %s322, 31
        %s326 = scalar_select %p325, %s322, 31
        %s327 = smul.addr %s324, 32
        %s328 = sadd.s32 %s326, %s327
        %s329 = smul.addr %s328, 8
        %s330 = scalar_lea.vmem %s0, %s329
        %s331 = smul.u32 32, %s28
        %s332 = smul.u32 2, %s29
        %p333 = scmp.lt.s32.totalorder %s27, 0
        %s334 = scalar_select %p333, %s27, 0
        %p335 = scmp.lt.s32.totalorder %s332, 3
        %s336 = scalar_select %p335, %s332, 3
        %s337 = smul.addr %s334, 4
        %s338 = sadd.s32 %s336, %s337
        %s339 = scalar_lea.vmem %s1, %s338
        %s340 = smul.u32 2, %s29
        %s341 = smul.u32 32, %s28
        %s342 = smul.u32 32, %s29
        %s343 = smul.u32 32, %s28
        %s344 = smul.u32 2, %s29
        %v345 = vld [vmem:[#allocation2] sm:$0xff]
        %v346 = vld [vmem:[#allocation2 + $0x8] sm:$0xff]
        %v347 = vld [vmem:[#allocation2 + $0x10] sm:$0xff]
        %v348 = vld [vmem:[#allocation2 + $0x18] sm:$0xff]
        %v349 = vld [vmem:[#allocation2 + $0x20] sm:$0xff]
        %v350 = vld [vmem:[#allocation2 + $0x28] sm:$0xff]
        %v351 = vld [vmem:[#allocation2 + $0x30] sm:$0xff]
        %v352 = vld [vmem:[#allocation2 + $0x38] sm:$0xff]
        %v353 = vld [vmem:[#allocation2 + $0x40] sm:$0xff]
        %v354 = vld [vmem:[#allocation2 + $0x48] sm:$0xff]
        %v355 = vld [vmem:[#allocation2 + $0x50] sm:$0xff]
        %v356 = vld [vmem:[#allocation2 + $0x58] sm:$0xff]
        %v357 = vld [vmem:[#allocation2 + $0x60] sm:$0xff]
        %v358 = vld [vmem:[#allocation2 + $0x68] sm:$0xff]
        %v359 = vld [vmem:[#allocation2 + $0x70] sm:$0xff]
        %v360 = vld [vmem:[#allocation2 + $0x78] sm:$0xff]
        %v361 = vld [vmem:[#allocation2 + $0x80] sm:$0xff]
        %v362 = vld [vmem:[#allocation2 + $0x88] sm:$0xff]
        %v363 = vld [vmem:[#allocation2 + $0x90] sm:$0xff]
        %v364 = vld [vmem:[#allocation2 + $0x98] sm:$0xff]
        %v365 = vld [vmem:[#allocation2 + $0xa0] sm:$0xff]
        %v366 = vld [vmem:[#allocation2 + $0xa8] sm:$0xff]
        %v367 = vld [vmem:[#allocation2 + $0xb0] sm:$0xff]
        %v368 = vld [vmem:[#allocation2 + $0xb8] sm:$0xff]
        %v369 = vld [vmem:[#allocation2 + $0xc0] sm:$0xff]
        %v370 = vld [vmem:[#allocation2 + $0xc8] sm:$0xff]
        %v371 = vld [vmem:[#allocation2 + $0xd0] sm:$0xff]
        %v372 = vld [vmem:[#allocation2 + $0xd8] sm:$0xff]
        %v373 = vld [vmem:[#allocation2 + $0xe0] sm:$0xff]
        %v374 = vld [vmem:[#allocation2 + $0xe8] sm:$0xff]
        %v375 = vld [vmem:[#allocation2 + $0xf0] sm:$0xff]
        %v376 = vld [vmem:[#allocation2 + $0xf8] sm:$0xff]
        %v377 = vld [vmem:[#allocation2 + $0x100] sm:$0xff]
        %v378 = vld [vmem:[#allocation2 + $0x108] sm:$0xff]
        %v379 = vld [vmem:[#allocation2 + $0x110] sm:$0xff]
        %v380 = vld [vmem:[#allocation2 + $0x118] sm:$0xff]
        %v381 = vld [vmem:[#allocation2 + $0x120] sm:$0xff]
        %v382 = vld [vmem:[#allocation2 + $0x128] sm:$0xff]
        %v383 = vld [vmem:[#allocation2 + $0x130] sm:$0xff]
        %v384 = vld [vmem:[#allocation2 + $0x138] sm:$0xff]
        %v385 = vld [vmem:[#allocation2 + $0x140] sm:$0xff]
        %v386 = vld [vmem:[#allocation2 + $0x148] sm:$0xff]
        %v387 = vld [vmem:[#allocation2 + $0x150] sm:$0xff]
        %v388 = vld [vmem:[#allocation2 + $0x158] sm:$0xff]
        %v389 = vld [vmem:[#allocation2 + $0x160] sm:$0xff]
        %v390 = vld [vmem:[#allocation2 + $0x168] sm:$0xff]
        %v391 = vld [vmem:[#allocation2 + $0x170] sm:$0xff]
        %v392 = vld [vmem:[#allocation2 + $0x178] sm:$0xff]
        %v393 = vld [vmem:[#allocation2 + $0x180] sm:$0xff]
        %v394 = vld [vmem:[#allocation2 + $0x188] sm:$0xff]
        %v395 = vld [vmem:[#allocation2 + $0x190] sm:$0xff]
        %v396 = vld [vmem:[#allocation2 + $0x198] sm:$0xff]
        %v397 = vld [vmem:[#allocation2 + $0x1a0] sm:$0xff]
        %v398 = vld [vmem:[#allocation2 + $0x1a8] sm:$0xff]
        %v399 = vld [vmem:[#allocation2 + $0x1b0] sm:$0xff]
        %v400 = vld [vmem:[#allocation2 + $0x1b8] sm:$0xff]
        %v401 = vld [vmem:[#allocation2 + $0x1c0] sm:$0xff]
        %v402 = vld [vmem:[#allocation2 + $0x1c8] sm:$0xff]
        %v403 = vld [vmem:[#allocation2 + $0x1d0] sm:$0xff]
        %v404 = vld [vmem:[#allocation2 + $0x1d8] sm:$0xff]
        %v405 = vld [vmem:[#allocation2 + $0x1e0] sm:$0xff]
        %v406 = vld [vmem:[#allocation2 + $0x1e8] sm:$0xff]
        %v407 = vld [vmem:[#allocation2 + $0x1f0] sm:$0xff]
        %v408 = vld [vmem:[#allocation2 + $0x1f8] sm:$0xff]
        %v409 = vld [vmem:[#allocation2 + $0x200] sm:$0xff]
        %v410 = vld [vmem:[#allocation2 + $0x208] sm:$0xff]
        %v411 = vld [vmem:[#allocation2 + $0x210] sm:$0xff]
        %v412 = vld [vmem:[#allocation2 + $0x218] sm:$0xff]
        %v413 = vld [vmem:[#allocation2 + $0x220] sm:$0xff]
        %v414 = vld [vmem:[#allocation2 + $0x228] sm:$0xff]
        %v415 = vld [vmem:[#allocation2 + $0x230] sm:$0xff]
        %v416 = vld [vmem:[#allocation2 + $0x238] sm:$0xff]
        %v417 = vld [vmem:[#allocation2 + $0x240] sm:$0xff]
        %v418 = vld [vmem:[#allocation2 + $0x248] sm:$0xff]
        %v419 = vld [vmem:[#allocation2 + $0x250] sm:$0xff]
        %v420 = vld [vmem:[#allocation2 + $0x258] sm:$0xff]
        %v421 = vld [vmem:[#allocation2 + $0x260] sm:$0xff]
        %v422 = vld [vmem:[#allocation2 + $0x268] sm:$0xff]
        %v423 = vld [vmem:[#allocation2 + $0x270] sm:$0xff]
        %v424 = vld [vmem:[#allocation2 + $0x278] sm:$0xff]
        %v425 = vld [vmem:[#allocation2 + $0x280] sm:$0xff]
        %v426 = vld [vmem:[#allocation2 + $0x288] sm:$0xff]
        %v427 = vld [vmem:[#allocation2 + $0x290] sm:$0xff]
        %v428 = vld [vmem:[#allocation2 + $0x298] sm:$0xff]
        %v429 = vld [vmem:[#allocation2 + $0x2a0] sm:$0xff]
        %v430 = vld [vmem:[#allocation2 + $0x2a8] sm:$0xff]
        %v431 = vld [vmem:[#allocation2 + $0x2b0] sm:$0xff]
        %v432 = vld [vmem:[#allocation2 + $0x2b8] sm:$0xff]
        %v433 = vld [vmem:[#allocation2 + $0x2c0] sm:$0xff]
        %v434 = vld [vmem:[#allocation2 + $0x2c8] sm:$0xff]
        %v435 = vld [vmem:[#allocation2 + $0x2d0] sm:$0xff]
        %v436 = vld [vmem:[#allocation2 + $0x2d8] sm:$0xff]
        %v437 = vld [vmem:[#allocation2 + $0x2e0] sm:$0xff]
        %v438 = vld [vmem:[#allocation2 + $0x2e8] sm:$0xff]
        %v439 = vld [vmem:[#allocation2 + $0x2f0] sm:$0xff]
        %v440 = vld [vmem:[#allocation2 + $0x2f8] sm:$0xff]
        %v441 = vld [vmem:[%s280] sm:$0xff]
        %v442 = vld [vmem:[%s280 + $0x8] sm:$0xff]
        %v443 = vld [vmem:[%s280 + $0x10] sm:$0xff]
        %v444 = vld [vmem:[%s280 + $0x18] sm:$0xff]
        %v445 = vld [vmem:[%s280 + $0x20] sm:$0xff]
        %v446 = vld [vmem:[%s280 + $0x28] sm:$0xff]
        %v447 = vld [vmem:[%s280 + $0x30] sm:$0xff]
        %v448 = vld [vmem:[%s280 + $0x38] sm:$0xff]
        %v449 = vld [vmem:[%s280 + $0x40] sm:$0xff]
        %v450 = vld [vmem:[%s280 + $0x48] sm:$0xff]
        %v451 = vld [vmem:[%s280 + $0x50] sm:$0xff]
        %v452 = vld [vmem:[%s280 + $0x58] sm:$0xff]
        %v453 = vld [vmem:[%s280 + $0x60] sm:$0xff]
        %v454 = vld [vmem:[%s280 + $0x68] sm:$0xff]
        %v455 = vld [vmem:[%s280 + $0x70] sm:$0xff]
        %v456 = vld [vmem:[%s280 + $0x78] sm:$0xff]
        %v457 = vld [vmem:[%s280 + $0x80] sm:$0xff]
        %v458 = vld [vmem:[%s280 + $0x88] sm:$0xff]
        %v459 = vld [vmem:[%s280 + $0x90] sm:$0xff]
        %v460 = vld [vmem:[%s280 + $0x98] sm:$0xff]
        %v461 = vld [vmem:[%s280 + $0xa0] sm:$0xff]
        %v462 = vld [vmem:[%s280 + $0xa8] sm:$0xff]
        %v463 = vld [vmem:[%s280 + $0xb0] sm:$0xff]
        %v464 = vld [vmem:[%s280 + $0xb8] sm:$0xff]
        %v465 = vld [vmem:[%s280 + $0xc0] sm:$0xff]
        %v466 = vld [vmem:[%s280 + $0xc8] sm:$0xff]
        %v467 = vld [vmem:[%s280 + $0xd0] sm:$0xff]
        %v468 = vld [vmem:[%s280 + $0xd8] sm:$0xff]
        %v469 = vld [vmem:[%s280 + $0xe0] sm:$0xff]
        %v470 = vld [vmem:[%s280 + $0xe8] sm:$0xff]
        %v471 = vld [vmem:[%s280 + $0xf0] sm:$0xff]
        %v472 = vld [vmem:[%s280 + $0xf8] sm:$0xff]
        %v473 = vld [vmem:[%s280 + $0x100] sm:$0xff]
        %v474 = vld [vmem:[%s280 + $0x108] sm:$0xff]
        %v475 = vld [vmem:[%s280 + $0x110] sm:$0xff]
        %v476 = vld [vmem:[%s280 + $0x118] sm:$0xff]
        %v477 = vld [vmem:[%s280 + $0x120] sm:$0xff]
        %v478 = vld [vmem:[%s280 + $0x128] sm:$0xff]
        %v479 = vld [vmem:[%s280 + $0x130] sm:$0xff]
        %v480 = vld [vmem:[%s280 + $0x138] sm:$0xff]
        %v481 = vld [vmem:[%s280 + $0x140] sm:$0xff]
        %v482 = vld [vmem:[%s280 + $0x148] sm:$0xff]
        %v483 = vld [vmem:[%s280 + $0x150] sm:$0xff]
        %v484 = vld [vmem:[%s280 + $0x158] sm:$0xff]
        %v485 = vld [vmem:[%s280 + $0x160] sm:$0xff]
        %v486 = vld [vmem:[%s280 + $0x168] sm:$0xff]
        %v487 = vld [vmem:[%s280 + $0x170] sm:$0xff]
        %v488 = vld [vmem:[%s280 + $0x178] sm:$0xff]
        %v489 = vld [vmem:[%s280 + $0x180] sm:$0xff]
        %v490 = vld [vmem:[%s280 + $0x188] sm:$0xff]
        %v491 = vld [vmem:[%s280 + $0x190] sm:$0xff]
        %v492 = vld [vmem:[%s280 + $0x198] sm:$0xff]
        %v493 = vld [vmem:[%s280 + $0x1a0] sm:$0xff]
        %v494 = vld [vmem:[%s280 + $0x1a8] sm:$0xff]
        %v495 = vld [vmem:[%s280 + $0x1b0] sm:$0xff]
        %v496 = vld [vmem:[%s280 + $0x1b8] sm:$0xff]
        %v497 = vld [vmem:[%s280 + $0x1c0] sm:$0xff]
        %v498 = vld [vmem:[%s280 + $0x1c8] sm:$0xff]
        %v499 = vld [vmem:[%s280 + $0x1d0] sm:$0xff]
        %v500 = vld [vmem:[%s280 + $0x1d8] sm:$0xff]
        %v501 = vld [vmem:[%s280 + $0x1e0] sm:$0xff]
        %v502 = vld [vmem:[%s280 + $0x1e8] sm:$0xff]
        %v503 = vld [vmem:[%s280 + $0x1f0] sm:$0xff]
        %v504 = vld [vmem:[%s280 + $0x1f8] sm:$0xff]
        %v505 = vld [vmem:[%s280 + $0x200] sm:$0xff]
        %v506 = vld [vmem:[%s280 + $0x208] sm:$0xff]
        %v507 = vld [vmem:[%s280 + $0x210] sm:$0xff]
        %v508 = vld [vmem:[%s280 + $0x218] sm:$0xff]
        %v509 = vld [vmem:[%s280 + $0x220] sm:$0xff]
        %v510 = vld [vmem:[%s280 + $0x228] sm:$0xff]
        %v511 = vld [vmem:[%s280 + $0x230] sm:$0xff]
        %v512 = vld [vmem:[%s280 + $0x238] sm:$0xff]
        %v513 = vld [vmem:[%s280 + $0x240] sm:$0xff]
        %v514 = vld [vmem:[%s280 + $0x248] sm:$0xff]
        %v515 = vld [vmem:[%s280 + $0x250] sm:$0xff]
        %v516 = vld [vmem:[%s280 + $0x258] sm:$0xff]
        %v517 = vld [vmem:[%s280 + $0x260] sm:$0xff]
        %v518 = vld [vmem:[%s280 + $0x268] sm:$0xff]
        %v519 = vld [vmem:[%s280 + $0x270] sm:$0xff]
        %v520 = vld [vmem:[%s280 + $0x278] sm:$0xff]
        %v521 = vld [vmem:[%s280 + $0x280] sm:$0xff]
        %v522 = vld [vmem:[%s280 + $0x288] sm:$0xff]
        %v523 = vld [vmem:[%s280 + $0x290] sm:$0xff]
        %v524 = vld [vmem:[%s280 + $0x298] sm:$0xff]
        %v525 = vld [vmem:[%s280 + $0x2a0] sm:$0xff]
        %v526 = vld [vmem:[%s280 + $0x2a8] sm:$0xff]
        %v527 = vld [vmem:[%s280 + $0x2b0] sm:$0xff]
        %v528 = vld [vmem:[%s280 + $0x2b8] sm:$0xff]
        %v529 = vld [vmem:[%s280 + $0x2c0] sm:$0xff]
        %v530 = vld [vmem:[%s280 + $0x2c8] sm:$0xff]
        %v531 = vld [vmem:[%s280 + $0x2d0] sm:$0xff]
        %v532 = vld [vmem:[%s280 + $0x2d8] sm:$0xff]
        %v533 = vld [vmem:[%s280 + $0x2e0] sm:$0xff]
        %v534 = vld [vmem:[%s280 + $0x2e8] sm:$0xff]
        %v535 = vld [vmem:[%s280 + $0x2f0] sm:$0xff]
        %v536 = vld [vmem:[%s280 + $0x2f8] sm:$0xff]
        %537 = vmatprep.subr.mxu0 %v442
        %538 = vmatpush1.xpose.msra.mxu0 %v441
        %539 = vmatprep.subr.mxu0 %v445
        %540 = vmatpush1.xpose.msra.mxu0 %v444
        %541 = vmatprep.subr.mxu0 %v448
        %542 = vmatpush1.xpose.msra.mxu0 %v447
        %543 = vmatprep.subr.mxu0 %v451
        %544 = vmatpush1.xpose.msra.mxu0 %v450
        %545 = vmatprep.subr.mxu0 %v454
        %546 = vmatpush1.xpose.msra.mxu0 %v453
        %547 = vmatprep.subr.mxu0 %v457
        %548 = vmatpush1.xpose.msra.mxu0 %v456
        %549 = vmatprep.subr.mxu0 %v460
        %550 = vmatpush1.xpose.msra.mxu0 %v459
        %551 = vmatprep.subr.mxu0 %v463
        %552 = vmatpush1.xpose.msra.mxu0 %v462
        %553 = vmatprep.subr.mxu0 %v466
        %554 = vmatpush1.xpose.msra.mxu0 %v465
        %555 = vmatprep.subr.mxu0 %v469
        %556 = vmatpush1.xpose.msra.mxu0 %v468
        %557 = vmatprep.subr.mxu0 %v472
        %558 = vmatpush1.xpose.msra.mxu0 %v471
        %559 = vmatprep.subr.mxu0 %v475
        %560 = vmatpush1.xpose.msra.mxu0 %v474
        %561 = vmatprep.subr.mxu0 %v478
        %562 = vmatpush1.xpose.msra.mxu0 %v477
        %563 = vmatprep.subr.mxu0 %v481
        %564 = vmatpush1.xpose.msra.mxu0 %v480
        %565 = vmatprep.subr.mxu0 %v484
        %566 = vmatpush1.xpose.msra.mxu0 %v483
        %567 = vmatprep.subr.mxu0 %v487
        %568 = vmatpush1.xpose.msra.mxu0 %v486
        %569 = vmatprep.subr.mxu0 %v490
        %570 = vmatpush1.xpose.msra.mxu0 %v489
        %571 = vmatprep.subr.mxu0 %v493
        %572 = vmatpush1.xpose.msra.mxu0 %v492
        %573 = vmatprep.subr.mxu0 %v496
        %574 = vmatpush1.xpose.msra.mxu0 %v495
        %575 = vmatprep.subr.mxu0 %v499
        %576 = vmatpush1.xpose.msra.mxu0 %v498
        %577 = vmatprep.subr.mxu0 %v502
        %578 = vmatpush1.xpose.msra.mxu0 %v501
        %579 = vmatprep.subr.mxu0 %v505
        %580 = vmatpush1.xpose.msra.mxu0 %v504
        %581 = vmatprep.subr.mxu0 %v508
        %582 = vmatpush1.xpose.msra.mxu0 %v507
        %583 = vmatprep.subr.mxu0 %v511
        %584 = vmatpush1.xpose.msra.mxu0 %v510
        %585 = vmatprep.subr.mxu0 %v514
        %586 = vmatpush1.xpose.msra.mxu0 %v513
        %587 = vmatprep.subr.mxu0 %v517
        %588 = vmatpush1.xpose.msra.mxu0 %v516
        %589 = vmatprep.subr.mxu0 %v520
        %590 = vmatpush1.xpose.msra.mxu0 %v519
        %591 = vmatprep.subr.mxu0 %v523
        %592 = vmatpush1.xpose.msra.mxu0 %v522
        %593 = vmatprep.subr.mxu0 %v526
        %594 = vmatpush1.xpose.msra.mxu0 %v525
        %595 = vmatprep.subr.mxu0 %v529
        %596 = vmatpush1.xpose.msra.mxu0 %v528
        %597 = vmatprep.subr.mxu0 %v532
        %598 = vmatpush1.xpose.msra.mxu0 %v531
        %599 = vmatprep.subr.mxu0 %v535
        %600 = vmatpush1.xpose.msra.mxu0 %v534
        %601 = vmatprep.mubr.f32.mxu0 %v346
        %602 = vmatmul.mubr.f32.gmra.mrb[0].mxu0 %v345
        %v603 = vpop.f32.mrb[0].mxu0
        %v604 = vadd.f32 0.0, %v603
        %v605 = vpop.f32.mrb[0].mxu0
        %v606 = vadd.f32 0.0, %v605
        %607 = vmatprep.mubr.f32.mxu0 %v349
        %608 = vmatmul.mubr.f32.gmra.mrb[0].mxu0 %v348
        %v609 = vpop.f32.mrb[0].mxu0
        %v610 = vadd.f32 0.0, %v609
        %v611 = vpop.f32.mrb[0].mxu0
        %v612 = vadd.f32 0.0, %v611
        %613 = vmatprep.mubr.f32.mxu0 %v352
        %614 = vmatmul.mubr.f32.gmra.mrb[0].mxu0 %v351
        %v615 = vpop.f32.mrb[0].mxu0
        %v616 = vadd.f32 0.0, %v615
        %v617 = vpop.f32.mrb[0].mxu0
        %v618 = vadd.f32 0.0, %v617
        %619 = vmatprep.mubr.f32.mxu0 %v355
        %620 = vmatmul.mubr.f32.gmra.mrb[0].mxu0 %v354
        %v621 = vpop.f32.mrb[0].mxu0
        %v622 = vadd.f32 0.0, %v621
        %v623 = vpop.f32.mrb[0].mxu0
        %v624 = vadd.f32 0.0, %v623
        %625 = vmatprep.mubr.f32.mxu0 %v358
        %626 = vmatmul.mubr.f32.gmra.mrb[0].mxu0 %v357
        %v627 = vpop.f32.mrb[0].mxu0
        %v628 = vadd.f32 0.0, %v627
        %v629 = vpop.f32.mrb[0].mxu0
        %v630 = vadd.f32 0.0, %v629
        %631 = vmatprep.mubr.f32.mxu0 %v361
        %632 = vmatmul.mubr.f32.gmra.mrb[0].mxu0 %v360
        %v633 = vpop.f32.mrb[0].mxu0
        %v634 = vadd.f32 0.0, %v633
        %v635 = vpop.f32.mrb[0].mxu0
        %v636 = vadd.f32 0.0, %v635
        %637 = vmatprep.mubr.f32.mxu0 %v364
        %638 = vmatmul.mubr.f32.gmra.mrb[0].mxu0 %v363
        %v639 = vpop.f32.mrb[0].mxu0
        %v640 = vadd.f32 0.0, %v639
        %v641 = vpop.f32.mrb[0].mxu0
        %v642 = vadd.f32 0.0, %v641
        %643 = vmatprep.mubr.f32.mxu0 %v367
        %644 = vmatmul.mubr.f32.gmra.mrb[0].mxu0 %v366
        %v645 = vpop.f32.mrb[0].mxu0
        %v646 = vadd.f32 0.0, %v645
        %v647 = vpop.f32.mrb[0].mxu0
        %v648 = vadd.f32 0.0, %v647
        %649 = vmatprep.mubr.f32.mxu0 %v370
        %650 = vmatmul.mubr.f32.gmra.mrb[0].mxu0 %v369
        %v651 = vpop.f32.mrb[0].mxu0
        %v652 = vadd.f32 0.0, %v651
        %v653 = vpop.f32.mrb[0].mxu0
        %v654 = vadd.f32 0.0, %v653
        %655 = vmatprep.mubr.f32.mxu0 %v373
        %656 = vmatmul.mubr.f32.gmra.mrb[0].mxu0 %v372
        %v657 = vpop.f32.mrb[0].mxu0
        %v658 = vadd.f32 0.0, %v657
        %v659 = vpop.f32.mrb[0].mxu0
        %v660 = vadd.f32 0.0, %v659
        %661 = vmatprep.mubr.f32.mxu0 %v376
        %662 = vmatmul.mubr.f32.gmra.mrb[0].mxu0 %v375
        %v663 = vpop.f32.mrb[0].mxu0
        %v664 = vadd.f32 0.0, %v663
        %v665 = vpop.f32.mrb[0].mxu0
        %v666 = vadd.f32 0.0, %v665
        %667 = vmatprep.mubr.f32.mxu0 %v379
        %668 = vmatmul.mubr.f32.gmra.mrb[0].mxu0 %v378
        %v669 = vpop.f32.mrb[0].mxu0
        %v670 = vadd.f32 0.0, %v669
        %v671 = vpop.f32.mrb[0].mxu0
        %v672 = vadd.f32 0.0, %v671
        %673 = vmatprep.mubr.f32.mxu0 %v382
        %674 = vmatmul.mubr.f32.gmra.mrb[0].mxu0 %v381
        %v675 = vpop.f32.mrb[0].mxu0
        %v676 = vadd.f32 0.0, %v675
        %v677 = vpop.f32.mrb[0].mxu0
        %v678 = vadd.f32 0.0, %v677
        %679 = vmatprep.mubr.f32.mxu0 %v385
        %680 = vmatmul.mubr.f32.gmra.mrb[0].mxu0 %v384
        %v681 = vpop.f32.mrb[0].mxu0
        %v682 = vadd.f32 0.0, %v681
        %v683 = vpop.f32.mrb[0].mxu0
        %v684 = vadd.f32 0.0, %v683
        %685 = vmatprep.mubr.f32.mxu0 %v388
        %686 = vmatmul.mubr.f32.gmra.mrb[0].mxu0 %v387
        %v687 = vpop.f32.mrb[0].mxu0
        %v688 = vadd.f32 0.0, %v687
        %v689 = vpop.f32.mrb[0].mxu0
        %v690 = vadd.f32 0.0, %v689
        %691 = vmatprep.mubr.f32.mxu0 %v391
        %692 = vmatmul.mubr.f32.gmra.mrb[0].mxu0 %v390
        %v693 = vpop.f32.mrb[0].mxu0
        %v694 = vadd.f32 0.0, %v693
        %v695 = vpop.f32.mrb[0].mxu0
        %v696 = vadd.f32 0.0, %v695
        %697 = vmatprep.mubr.f32.mxu0 %v394
        %698 = vmatmul.mubr.f32.gmra.mrb[0].mxu0 %v393
        %v699 = vpop.f32.mrb[0].mxu0
        %v700 = vadd.f32 0.0, %v699
        %v701 = vpop.f32.mrb[0].mxu0
        %v702 = vadd.f32 0.0, %v701
        %703 = vmatprep.mubr.f32.mxu0 %v397
        %704 = vmatmul.mubr.f32.gmra.mrb[0].mxu0 %v396
        %v705 = vpop.f32.mrb[0].mxu0
        %v706 = vadd.f32 0.0, %v705
        %v707 = vpop.f32.mrb[0].mxu0
        %v708 = vadd.f32 0.0, %v707
        %709 = vmatprep.mubr.f32.mxu0 %v400
        %710 = vmatmul.mubr.f32.gmra.mrb[0].mxu0 %v399
        %v711 = vpop.f32.mrb[0].mxu0
        %v712 = vadd.f32 0.0, %v711
        %v713 = vpop.f32.mrb[0].mxu0
        %v714 = vadd.f32 0.0, %v713
        %715 = vmatprep.mubr.f32.mxu0 %v403
        %716 = vmatmul.mubr.f32.gmra.mrb[0].mxu0 %v402
        %v717 = vpop.f32.mrb[0].mxu0
        %v718 = vadd.f32 0.0, %v717
        %v719 = vpop.f32.mrb[0].mxu0
        %v720 = vadd.f32 0.0, %v719
        %721 = vmatprep.mubr.f32.mxu0 %v406
        %722 = vmatmul.mubr.f32.gmra.mrb[0].mxu0 %v405
        %v723 = vpop.f32.mrb[0].mxu0
        %v724 = vadd.f32 0.0, %v723
        %v725 = vpop.f32.mrb[0].mxu0
        %v726 = vadd.f32 0.0, %v725
        %727 = vmatprep.mubr.f32.mxu0 %v409
        %728 = vmatmul.mubr.f32.gmra.mrb[0].mxu0 %v408
        %v729 = vpop.f32.mrb[0].mxu0
        %v730 = vadd.f32 0.0, %v729
        %v731 = vpop.f32.mrb[0].mxu0
        %v732 = vadd.f32 0.0, %v731
        %733 = vmatprep.mubr.f32.mxu0 %v412
        %734 = vmatmul.mubr.f32.gmra.mrb[0].mxu0 %v411
        %v735 = vpop.f32.mrb[0].mxu0
        %v736 = vadd.f32 0.0, %v735
        %v737 = vpop.f32.mrb[0].mxu0
        %v738 = vadd.f32 0.0, %v737
        %739 = vmatprep.mubr.f32.mxu0 %v415
        %740 = vmatmul.mubr.f32.gmra.mrb[0].mxu0 %v414
        %v741 = vpop.f32.mrb[0].mxu0
        %v742 = vadd.f32 0.0, %v741
        %v743 = vpop.f32.mrb[0].mxu0
        %v744 = vadd.f32 0.0, %v743
        %745 = vmatprep.mubr.f32.mxu0 %v418
        %746 = vmatmul.mubr.f32.gmra.mrb[0].mxu0 %v417
        %v747 = vpop.f32.mrb[0].mxu0
        %v748 = vadd.f32 0.0, %v747
        %v749 = vpop.f32.mrb[0].mxu0
        %v750 = vadd.f32 0.0, %v749
        %751 = vmatprep.mubr.f32.mxu0 %v421
        %752 = vmatmul.mubr.f32.gmra.mrb[0].mxu0 %v420
        %v753 = vpop.f32.mrb[0].mxu0
        %v754 = vadd.f32 0.0, %v753
        %v755 = vpop.f32.mrb[0].mxu0
        %v756 = vadd.f32 0.0, %v755
        %757 = vmatprep.mubr.f32.mxu0 %v424
        %758 = vmatmul.mubr.f32.gmra.mrb[0].mxu0 %v423
        %v759 = vpop.f32.mrb[0].mxu0
        %v760 = vadd.f32 0.0, %v759
        %v761 = vpop.f32.mrb[0].mxu0
        %v762 = vadd.f32 0.0, %v761
        %763 = vmatprep.mubr.f32.mxu0 %v427
        %764 = vmatmul.mubr.f32.gmra.mrb[0].mxu0 %v426
        %v765 = vpop.f32.mrb[0].mxu0
        %v766 = vadd.f32 0.0, %v765
        %v767 = vpop.f32.mrb[0].mxu0
        %v768 = vadd.f32 0.0, %v767
        %769 = vmatprep.mubr.f32.mxu0 %v430
        %770 = vmatmul.mubr.f32.gmra.mrb[0].mxu0 %v429
        %v771 = vpop.f32.mrb[0].mxu0
        %v772 = vadd.f32 0.0, %v771
        %v773 = vpop.f32.mrb[0].mxu0
        %v774 = vadd.f32 0.0, %v773
        %775 = vmatprep.mubr.f32.mxu0 %v433
        %776 = vmatmul.mubr.f32.gmra.mrb[0].mxu0 %v432
        %v777 = vpop.f32.mrb[0].mxu0
        %v778 = vadd.f32 0.0, %v777
        %v779 = vpop.f32.mrb[0].mxu0
        %v780 = vadd.f32 0.0, %v779
        %781 = vmatprep.mubr.f32.mxu0 %v436
        %782 = vmatmul.mubr.f32.gmra.mrb[0].mxu0 %v435
        %v783 = vpop.f32.mrb[0].mxu0
        %v784 = vadd.f32 0.0, %v783
        %v785 = vpop.f32.mrb[0].mxu0
        %v786 = vadd.f32 0.0, %v785
        %787 = vmatprep.mubr.f32.mxu0 %v439
        %788 = vmatmul.mubr.f32.gmra.mrb[0].mxu0 %v438
        %v789 = vpop.f32.mrb[0].mxu0
        %v790 = vadd.f32 0.0, %v789
        %v791 = vpop.f32.mrb[0].mxu0
        %v792 = vadd.f32 0.0, %v791
        %793 = vdwg.mxu0
        %794 = vmatprep.subr.mxu0 0.0
        %795 = vmatpush1.xpose.msra.mxu0 %v443
        %796 = vmatprep.subr.mxu0 0.0
        %797 = vmatpush1.xpose.msra.mxu0 %v446
        %798 = vmatprep.subr.mxu0 0.0
        %799 = vmatpush1.xpose.msra.mxu0 %v449
        %800 = vmatprep.subr.mxu0 0.0
        %801 = vmatpush1.xpose.msra.mxu0 %v452
        %802 = vmatprep.subr.mxu0 0.0
        %803 = vmatpush1.xpose.msra.mxu0 %v455
        %804 = vmatprep.subr.mxu0 0.0
        %805 = vmatpush1.xpose.msra.mxu0 %v458
        %806 = vmatprep.subr.mxu0 0.0
        %807 = vmatpush1.xpose.msra.mxu0 %v461
        %808 = vmatprep.subr.mxu0 0.0
        %809 = vmatpush1.xpose.msra.mxu0 %v464
        %810 = vmatprep.subr.mxu0 0.0
        %811 = vmatpush1.xpose.msra.mxu0 %v467
        %812 = vmatprep.subr.mxu0 0.0
        %813 = vmatpush1.xpose.msra.mxu0 %v470
        %814 = vmatprep.subr.mxu0 0.0
        %815 = vmatpush1.xpose.msra.mxu0 %v473
        %816 = vmatprep.subr.mxu0 0.0
        %817 = vmatpush1.xpose.msra.mxu0 %v476
        %818 = vmatprep.subr.mxu0 0.0
        %819 = vmatpush1.xpose.msra.mxu0 %v479
        %820 = vmatprep.subr.mxu0 0.0
        %821 = vmatpush1.xpose.msra.mxu0 %v482
        %822 = vmatprep.subr.mxu0 0.0
        %823 = vmatpush1.xpose.msra.mxu0 %v485
        %824 = vmatprep.subr.mxu0 0.0
        %825 = vmatpush1.xpose.msra.mxu0 %v488
        %826 = vmatprep.subr.mxu0 0.0
        %827 = vmatpush1.xpose.msra.mxu0 %v491
        %828 = vmatprep.subr.mxu0 0.0
        %829 = vmatpush1.xpose.msra.mxu0 %v494
        %830 = vmatprep.subr.mxu0 0.0
        %831 = vmatpush1.xpose.msra.mxu0 %v497
        %832 = vmatprep.subr.mxu0 0.0
        %833 = vmatpush1.xpose.msra.mxu0 %v500
        %834 = vmatprep.subr.mxu0 0.0
        %835 = vmatpush1.xpose.msra.mxu0 %v503
        %836 = vmatprep.subr.mxu0 0.0
        %837 = vmatpush1.xpose.msra.mxu0 %v506
        %838 = vmatprep.subr.mxu0 0.0
        %839 = vmatpush1.xpose.msra.mxu0 %v509
        %840 = vmatprep.subr.mxu0 0.0
        %841 = vmatpush1.xpose.msra.mxu0 %v512
        %842 = vmatprep.subr.mxu0 0.0
        %843 = vmatpush1.xpose.msra.mxu0 %v515
        %844 = vmatprep.subr.mxu0 0.0
        %845 = vmatpush1.xpose.msra.mxu0 %v518
        %846 = vmatprep.subr.mxu0 0.0
        %847 = vmatpush1.xpose.msra.mxu0 %v521
        %848 = vmatprep.subr.mxu0 0.0
        %849 = vmatpush1.xpose.msra.mxu0 %v524
        %850 = vmatprep.subr.mxu0 0.0
        %851 = vmatpush1.xpose.msra.mxu0 %v527
        %852 = vmatprep.subr.mxu0 0.0
        %853 = vmatpush1.xpose.msra.mxu0 %v530
        %854 = vmatprep.subr.mxu0 0.0
        %855 = vmatpush1.xpose.msra.mxu0 %v533
        %856 = vmatprep.subr.mxu0 0.0
        %857 = vmatpush1.xpose.msra.mxu0 %v536
        %858 = vmatprep.mubr.f32.mxu0 0.0
        %859 = vmatmul.mubr.f32.gmra.mrb[0].mxu0 %v347
        %v860 = vpop.f32.mrb[0].mxu0
        %v861 = vadd.f32 %v604, %v860
        %v862 = vpop.f32.mrb[0].mxu0
        %v863 = vadd.f32 %v606, %v862
        %864 = vmatprep.mubr.f32.mxu0 0.0
        %865 = vmatmul.mubr.f32.gmra.mrb[0].mxu0 %v350
        %v866 = vpop.f32.mrb[0].mxu0
        %v867 = vadd.f32 %v610, %v866
        %v868 = vpop.f32.mrb[0].mxu0
        %v869 = vadd.f32 %v612, %v868
        %870 = vmatprep.mubr.f32.mxu0 0.0
        %871 = vmatmul.mubr.f32.gmra.mrb[0].mxu0 %v353
        %v872 = vpop.f32.mrb[0].mxu0
        %v873 = vadd.f32 %v616, %v872
        %v874 = vpop.f32.mrb[0].mxu0
        %v875 = vadd.f32 %v618, %v874
        %876 = vmatprep.mubr.f32.mxu0 0.0
        %877 = vmatmul.mubr.f32.gmra.mrb[0].mxu0 %v356
        %v878 = vpop.f32.mrb[0].mxu0
        %v879 = vadd.f32 %v622, %v878
        %v880 = vpop.f32.mrb[0].mxu0
        %v881 = vadd.f32 %v624, %v880
        %882 = vmatprep.mubr.f32.mxu0 0.0
        %883 = vmatmul.mubr.f32.gmra.mrb[0].mxu0 %v359
        %v884 = vpop.f32.mrb[0].mxu0
        %v885 = vadd.f32 %v628, %v884
        %v886 = vpop.f32.mrb[0].mxu0
        %v887 = vadd.f32 %v630, %v886
        %888 = vmatprep.mubr.f32.mxu0 0.0
        %889 = vmatmul.mubr.f32.gmra.mrb[0].mxu0 %v362
        %v890 = vpop.f32.mrb[0].mxu0
        %v891 = vadd.f32 %v634, %v890
        %v892 = vpop.f32.mrb[0].mxu0
        %v893 = vadd.f32 %v636, %v892
        %894 = vmatprep.mubr.f32.mxu0 0.0
        %895 = vmatmul.mubr.f32.gmra.mrb[0].mxu0 %v365
        %v896 = vpop.f32.mrb[0].mxu0
        %v897 = vadd.f32 %v640, %v896
        %v898 = vpop.f32.mrb[0].mxu0
        %v899 = vadd.f32 %v642, %v898
        %900 = vmatprep.mubr.f32.mxu0 0.0
        %901 = vmatmul.mubr.f32.gmra.mrb[0].mxu0 %v368
        %v902 = vpop.f32.mrb[0].mxu0
        %v903 = vadd.f32 %v646, %v902
        %v904 = vpop.f32.mrb[0].mxu0
        %v905 = vadd.f32 %v648, %v904
        %906 = vmatprep.mubr.f32.mxu0 0.0
        %907 = vmatmul.mubr.f32.gmra.mrb[0].mxu0 %v371
        %v908 = vpop.f32.mrb[0].mxu0
        %v909 = vadd.f32 %v652, %v908
        %v910 = vpop.f32.mrb[0].mxu0
        %v911 = vadd.f32 %v654, %v910
        %912 = vmatprep.mubr.f32.mxu0 0.0
        %913 = vmatmul.mubr.f32.gmra.mrb[0].mxu0 %v374
        %v914 = vpop.f32.mrb[0].mxu0
        %v915 = vadd.f32 %v658, %v914
        %v916 = vpop.f32.mrb[0].mxu0
        %v917 = vadd.f32 %v660, %v916
        %918 = vmatprep.mubr.f32.mxu0 0.0
        %919 = vmatmul.mubr.f32.gmra.mrb[0].mxu0 %v377
        %v920 = vpop.f32.mrb[0].mxu0
        %v921 = vadd.f32 %v664, %v920
        %v922 = vpop.f32.mrb[0].mxu0
        %v923 = vadd.f32 %v666, %v922
        %924 = vmatprep.mubr.f32.mxu0 0.0
        %925 = vmatmul.mubr.f32.gmra.mrb[0].mxu0 %v380
        %v926 = vpop.f32.mrb[0].mxu0
        %v927 = vadd.f32 %v670, %v926
        %v928 = vpop.f32.mrb[0].mxu0
        %v929 = vadd.f32 %v672, %v928
        %930 = vmatprep.mubr.f32.mxu0 0.0
        %931 = vmatmul.mubr.f32.gmra.mrb[0].mxu0 %v383
        %v932 = vpop.f32.mrb[0].mxu0
        %v933 = vadd.f32 %v676, %v932
        %v934 = vpop.f32.mrb[0].mxu0
        %v935 = vadd.f32 %v678, %v934
        %936 = vmatprep.mubr.f32.mxu0 0.0
        %937 = vmatmul.mubr.f32.gmra.mrb[0].mxu0 %v386
        %v938 = vpop.f32.mrb[0].mxu0
        %v939 = vadd.f32 %v682, %v938
        %v940 = vpop.f32.mrb[0].mxu0
        %v941 = vadd.f32 %v684, %v940
        %942 = vmatprep.mubr.f32.mxu0 0.0
        %943 = vmatmul.mubr.f32.gmra.mrb[0].mxu0 %v389
        %v944 = vpop.f32.mrb[0].mxu0
        %v945 = vadd.f32 %v688, %v944
        %v946 = vpop.f32.mrb[0].mxu0
        %v947 = vadd.f32 %v690, %v946
        %948 = vmatprep.mubr.f32.mxu0 0.0
        %949 = vmatmul.mubr.f32.gmra.mrb[0].mxu0 %v392
        %v950 = vpop.f32.mrb[0].mxu0
        %v951 = vadd.f32 %v694, %v950
        %v952 = vpop.f32.mrb[0].mxu0
        %v953 = vadd.f32 %v696, %v952
        %954 = vmatprep.mubr.f32.mxu0 0.0
        %955 = vmatmul.mubr.f32.gmra.mrb[0].mxu0 %v395
        %v956 = vpop.f32.mrb[0].mxu0
        %v957 = vadd.f32 %v700, %v956
        %v958 = vpop.f32.mrb[0].mxu0
        %v959 = vadd.f32 %v702, %v958
        %960 = vmatprep.mubr.f32.mxu0 0.0
        %961 = vmatmul.mubr.f32.gmra.mrb[0].mxu0 %v398
        %v962 = vpop.f32.mrb[0].mxu0
        %v963 = vadd.f32 %v706, %v962
        %v964 = vpop.f32.mrb[0].mxu0
        %v965 = vadd.f32 %v708, %v964
        %966 = vmatprep.mubr.f32.mxu0 0.0
        %967 = vmatmul.mubr.f32.gmra.mrb[0].mxu0 %v401
        %v968 = vpop.f32.mrb[0].mxu0
        %v969 = vadd.f32 %v712, %v968
        %v970 = vpop.f32.mrb[0].mxu0
        %v971 = vadd.f32 %v714, %v970
        %972 = vmatprep.mubr.f32.mxu0 0.0
        %973 = vmatmul.mubr.f32.gmra.mrb[0].mxu0 %v404
        %v974 = vpop.f32.mrb[0].mxu0
        %v975 = vadd.f32 %v718, %v974
        %v976 = vpop.f32.mrb[0].mxu0
        %v977 = vadd.f32 %v720, %v976
        %978 = vmatprep.mubr.f32.mxu0 0.0
        %979 = vmatmul.mubr.f32.gmra.mrb[0].mxu0 %v407
        %v980 = vpop.f32.mrb[0].mxu0
        %v981 = vadd.f32 %v724, %v980
        %v982 = vpop.f32.mrb[0].mxu0
        %v983 = vadd.f32 %v726, %v982
        %984 = vmatprep.mubr.f32.mxu0 0.0
        %985 = vmatmul.mubr.f32.gmra.mrb[0].mxu0 %v410
        %v986 = vpop.f32.mrb[0].mxu0
        %v987 = vadd.f32 %v730, %v986
        %v988 = vpop.f32.mrb[0].mxu0
        %v989 = vadd.f32 %v732, %v988
        %990 = vmatprep.mubr.f32.mxu0 0.0
        %991 = vmatmul.mubr.f32.gmra.mrb[0].mxu0 %v413
        %v992 = vpop.f32.mrb[0].mxu0
        %v993 = vadd.f32 %v736, %v992
        %v994 = vpop.f32.mrb[0].mxu0
        %v995 = vadd.f32 %v738, %v994
        %996 = vmatprep.mubr.f32.mxu0 0.0
        %997 = vmatmul.mubr.f32.gmra.mrb[0].mxu0 %v416
        %v998 = vpop.f32.mrb[0].mxu0
        %v999 = vadd.f32 %v742, %v998
        %v1000 = vpop.f32.mrb[0].mxu0
        %v1001 = vadd.f32 %v744, %v1000
        %1002 = vmatprep.mubr.f32.mxu0 0.0
        %1003 = vmatmul.mubr.f32.gmra.mrb[0].mxu0 %v419
        %v1004 = vpop.f32.mrb[0].mxu0
        %v1005 = vadd.f32 %v748, %v1004
        %v1006 = vpop.f32.mrb[0].mxu0
        %v1007 = vadd.f32 %v750, %v1006
        %1008 = vmatprep.mubr.f32.mxu0 0.0
        %1009 = vmatmul.mubr.f32.gmra.mrb[0].mxu0 %v422
        %v1010 = vpop.f32.mrb[0].mxu0
        %v1011 = vadd.f32 %v754, %v1010
        %v1012 = vpop.f32.mrb[0].mxu0
        %v1013 = vadd.f32 %v756, %v1012
        %1014 = vmatprep.mubr.f32.mxu0 0.0
        %1015 = vmatmul.mubr.f32.gmra.mrb[0].mxu0 %v425
        %v1016 = vpop.f32.mrb[0].mxu0
        %v1017 = vadd.f32 %v760, %v1016
        %v1018 = vpop.f32.mrb[0].mxu0
        %v1019 = vadd.f32 %v762, %v1018
        %1020 = vmatprep.mubr.f32.mxu0 0.0
        %1021 = vmatmul.mubr.f32.gmra.mrb[0].mxu0 %v428
        %v1022 = vpop.f32.mrb[0].mxu0
        %v1023 = vadd.f32 %v766, %v1022
        %v1024 = vpop.f32.mrb[0].mxu0
        %v1025 = vadd.f32 %v768, %v1024
        %1026 = vmatprep.mubr.f32.mxu0 0.0
        %1027 = vmatmul.mubr.f32.gmra.mrb[0].mxu0 %v431
        %v1028 = vpop.f32.mrb[0].mxu0
        %v1029 = vadd.f32 %v772, %v1028
        %v1030 = vpop.f32.mrb[0].mxu0
        %v1031 = vadd.f32 %v774, %v1030
        %1032 = vmatprep.mubr.f32.mxu0 0.0
        %1033 = vmatmul.mubr.f32.gmra.mrb[0].mxu0 %v434
        %v1034 = vpop.f32.mrb[0].mxu0
        %v1035 = vadd.f32 %v778, %v1034
        %v1036 = vpop.f32.mrb[0].mxu0
        %v1037 = vadd.f32 %v780, %v1036
        %1038 = vmatprep.mubr.f32.mxu0 0.0
        %1039 = vmatmul.mubr.f32.gmra.mrb[0].mxu0 %v437
        %v1040 = vpop.f32.mrb[0].mxu0
        %v1041 = vadd.f32 %v784, %v1040
        %v1042 = vpop.f32.mrb[0].mxu0
        %v1043 = vadd.f32 %v786, %v1042
        %1044 = vmatprep.mubr.f32.mxu0 0.0
        %1045 = vmatmul.mubr.f32.gmra.mrb[0].mxu0 %v440
        %v1046 = vpop.f32.mrb[0].mxu0
        %v1047 = vadd.f32 %v790, %v1046
        %v1048 = vpop.f32.mrb[0].mxu0
        %v1049 = vadd.f32 %v792, %v1048
        %1050 = vdwg.mxu0
        %v1051 = vld [vmem:[%s330] sm:$0xff]
        %v1052 = vld [vmem:[%s330 + $0x8] sm:$0xff]
        %v1053 = vld [vmem:[%s330 + $0x10] sm:$0xff]
        %v1054 = vld [vmem:[%s330 + $0x18] sm:$0xff]
        %v1055 = vld [vmem:[%s330 + $0x20] sm:$0xff]
        %v1056 = vld [vmem:[%s330 + $0x28] sm:$0xff]
        %v1057 = vld [vmem:[%s330 + $0x30] sm:$0xff]
        %v1058 = vld [vmem:[%s330 + $0x38] sm:$0xff]
        %v1059 = vld [vmem:[%s330 + $0x40] sm:$0xff]
        %v1060 = vld [vmem:[%s330 + $0x48] sm:$0xff]
        %v1061 = vld [vmem:[%s330 + $0x50] sm:$0xff]
        %v1062 = vld [vmem:[%s330 + $0x58] sm:$0xff]
        %v1063 = vld [vmem:[%s330 + $0x60] sm:$0xff]
        %v1064 = vld [vmem:[%s330 + $0x68] sm:$0xff]
        %v1065 = vld [vmem:[%s330 + $0x70] sm:$0xff]
        %v1066 = vld [vmem:[%s330 + $0x78] sm:$0xff]
        %v1067 = vld [vmem:[%s330 + $0x80] sm:$0xff]
        %v1068 = vld [vmem:[%s330 + $0x88] sm:$0xff]
        %v1069 = vld [vmem:[%s330 + $0x90] sm:$0xff]
        %v1070 = vld [vmem:[%s330 + $0x98] sm:$0xff]
        %v1071 = vld [vmem:[%s330 + $0xa0] sm:$0xff]
        %v1072 = vld [vmem:[%s330 + $0xa8] sm:$0xff]
        %v1073 = vld [vmem:[%s330 + $0xb0] sm:$0xff]
        %v1074 = vld [vmem:[%s330 + $0xb8] sm:$0xff]
        %v1075 = vld [vmem:[%s330 + $0xc0] sm:$0xff]
        %v1076 = vld [vmem:[%s330 + $0xc8] sm:$0xff]
        %v1077 = vld [vmem:[%s330 + $0xd0] sm:$0xff]
        %v1078 = vld [vmem:[%s330 + $0xd8] sm:$0xff]
        %v1079 = vld [vmem:[%s330 + $0xe0] sm:$0xff]
        %v1080 = vld [vmem:[%s330 + $0xe8] sm:$0xff]
        %v1081 = vld [vmem:[%s330 + $0xf0] sm:$0xff]
        %v1082 = vld [vmem:[%s330 + $0xf8] sm:$0xff]
        %v1083 = vld [vmem:[%s339] sm:$0x3]
        %1085 = vset.pattern.permute.xlu0 0
        %1086 = vperm.xlu0 %1085, %v1051
        %v1087 = vpop.permute.xlu0 %1086
        %1090 = vset.pattern.permute.xlu0 0
        %1091 = vperm.xlu0 %1090, %v1052
        %v1092 = vpop.permute.xlu0 %1091
        %1095 = vset.pattern.permute.xlu0 0
        %1096 = vperm.xlu0 %1095, %v1053
        %v1097 = vpop.permute.xlu0 %1096
        %1100 = vset.pattern.permute.xlu0 0
        %1101 = vperm.xlu0 %1100, %v1054
        %v1102 = vpop.permute.xlu0 %1101
        %1105 = vset.pattern.permute.xlu0 0
        %1106 = vperm.xlu0 %1105, %v1055
        %v1107 = vpop.permute.xlu0 %1106
        %1110 = vset.pattern.permute.xlu0 0
        %1111 = vperm.xlu0 %1110, %v1056
        %v1112 = vpop.permute.xlu0 %1111
        %1115 = vset.pattern.permute.xlu0 0
        %1116 = vperm.xlu0 %1115, %v1057
        %v1117 = vpop.permute.xlu0 %1116
        %1120 = vset.pattern.permute.xlu0 0
        %1121 = vperm.xlu0 %1120, %v1058
        %v1122 = vpop.permute.xlu0 %1121
        %1125 = vset.pattern.permute.xlu0 0
        %1126 = vperm.xlu0 %1125, %v1059
        %v1127 = vpop.permute.xlu0 %1126
        %1130 = vset.pattern.permute.xlu0 0
        %1131 = vperm.xlu0 %1130, %v1060
        %v1132 = vpop.permute.xlu0 %1131
        %1135 = vset.pattern.permute.xlu0 0
        %1136 = vperm.xlu0 %1135, %v1061
        %v1137 = vpop.permute.xlu0 %1136
        %1140 = vset.pattern.permute.xlu0 0
        %1141 = vperm.xlu0 %1140, %v1062
        %v1142 = vpop.permute.xlu0 %1141
        %1145 = vset.pattern.permute.xlu0 0
        %1146 = vperm.xlu0 %1145, %v1063
        %v1147 = vpop.permute.xlu0 %1146
        %1150 = vset.pattern.permute.xlu0 0
        %1151 = vperm.xlu0 %1150, %v1064
        %v1152 = vpop.permute.xlu0 %1151
        %1155 = vset.pattern.permute.xlu0 0
        %1156 = vperm.xlu0 %1155, %v1065
        %v1157 = vpop.permute.xlu0 %1156
        %1160 = vset.pattern.permute.xlu0 0
        %1161 = vperm.xlu0 %1160, %v1066
        %v1162 = vpop.permute.xlu0 %1161
        %1165 = vset.pattern.permute.xlu0 0
        %1166 = vperm.xlu0 %1165, %v1067
        %v1167 = vpop.permute.xlu0 %1166
        %1170 = vset.pattern.permute.xlu0 0
        %1171 = vperm.xlu0 %1170, %v1068
        %v1172 = vpop.permute.xlu0 %1171
        %1175 = vset.pattern.permute.xlu0 0
        %1176 = vperm.xlu0 %1175, %v1069
        %v1177 = vpop.permute.xlu0 %1176
        %1180 = vset.pattern.permute.xlu0 0
        %1181 = vperm.xlu0 %1180, %v1070
        %v1182 = vpop.permute.xlu0 %1181
        %1185 = vset.pattern.permute.xlu0 0
        %1186 = vperm.xlu0 %1185, %v1071
        %v1187 = vpop.permute.xlu0 %1186
        %1190 = vset.pattern.permute.xlu0 0
        %1191 = vperm.xlu0 %1190, %v1072
        %v1192 = vpop.permute.xlu0 %1191
        %1195 = vset.pattern.permute.xlu0 0
        %1196 = vperm.xlu0 %1195, %v1073
        %v1197 = vpop.permute.xlu0 %1196
        %1200 = vset.pattern.permute.xlu0 0
        %1201 = vperm.xlu0 %1200, %v1074
        %v1202 = vpop.permute.xlu0 %1201
        %1205 = vset.pattern.permute.xlu0 0
        %1206 = vperm.xlu0 %1205, %v1075
        %v1207 = vpop.permute.xlu0 %1206
        %1210 = vset.pattern.permute.xlu0 0
        %1211 = vperm.xlu0 %1210, %v1076
        %v1212 = vpop.permute.xlu0 %1211
        %1215 = vset.pattern.permute.xlu0 0
        %1216 = vperm.xlu0 %1215, %v1077
        %v1217 = vpop.permute.xlu0 %1216
        %1220 = vset.pattern.permute.xlu0 0
        %1221 = vperm.xlu0 %1220, %v1078
        %v1222 = vpop.permute.xlu0 %1221
        %1225 = vset.pattern.permute.xlu0 0
        %1226 = vperm.xlu0 %1225, %v1079
        %v1227 = vpop.permute.xlu0 %1226
        %1230 = vset.pattern.permute.xlu0 0
        %1231 = vperm.xlu0 %1230, %v1080
        %v1232 = vpop.permute.xlu0 %1231
        %1235 = vset.pattern.permute.xlu0 0
        %1236 = vperm.xlu0 %1235, %v1081
        %v1237 = vpop.permute.xlu0 %1236
        %1240 = vset.pattern.permute.xlu0 0
        %1241 = vperm.xlu0 %1240, %v1082
        %v1242 = vpop.permute.xlu0 %1241
        %v1245 = vlaneseq
        %v1246 = vshrl.u32 %v1245, 7
        %v1247 = vsub.s32 0, %v1246
        %v1248 = vrot.slane %v1083, %v1247
        %v1249 = vlaneseq
        %v1250 = vshrl.u32 %v1249, 7
        %v1251 = vsub.s32 1, %v1250
        %v1252 = vrot.slane %v1083, %v1251
        %v1255 = vadd.f32 %v1087, %v1248
        %v1256 = vadd.f32 %v1087, %v1252
        %v1257 = vadd.f32 %v1092, %v1248
        %v1258 = vadd.f32 %v1092, %v1252
        %v1259 = vadd.f32 %v1097, %v1248
        %v1260 = vadd.f32 %v1097, %v1252
        %v1261 = vadd.f32 %v1102, %v1248
        %v1262 = vadd.f32 %v1102, %v1252
        %v1263 = vadd.f32 %v1107, %v1248
        %v1264 = vadd.f32 %v1107, %v1252
        %v1265 = vadd.f32 %v1112, %v1248
        %v1266 = vadd.f32 %v1112, %v1252
        %v1267 = vadd.f32 %v1117, %v1248
        %v1268 = vadd.f32 %v1117, %v1252
        %v1269 = vadd.f32 %v1122, %v1248
        %v1270 = vadd.f32 %v1122, %v1252
        %v1271 = vadd.f32 %v1127, %v1248
        %v1272 = vadd.f32 %v1127, %v1252
        %v1273 = vadd.f32 %v1132, %v1248
        %v1274 = vadd.f32 %v1132, %v1252
        %v1275 = vadd.f32 %v1137, %v1248
        %v1276 = vadd.f32 %v1137, %v1252
        %v1277 = vadd.f32 %v1142, %v1248
        %v1278 = vadd.f32 %v1142, %v1252
        %v1279 = vadd.f32 %v1147, %v1248
        %v1280 = vadd.f32 %v1147, %v1252
        %v1281 = vadd.f32 %v1152, %v1248
        %v1282 = vadd.f32 %v1152, %v1252
        %v1283 = vadd.f32 %v1157, %v1248
        %v1284 = vadd.f32 %v1157, %v1252
        %v1285 = vadd.f32 %v1162, %v1248
        %v1286 = vadd.f32 %v1162, %v1252
        %v1287 = vadd.f32 %v1167, %v1248
        %v1288 = vadd.f32 %v1167, %v1252
        %v1289 = vadd.f32 %v1172, %v1248
        %v1290 = vadd.f32 %v1172, %v1252
        %v1291 = vadd.f32 %v1177, %v1248
        %v1292 = vadd.f32 %v1177, %v1252
        %v1293 = vadd.f32 %v1182, %v1248
        %v1294 = vadd.f32 %v1182, %v1252
        %v1295 = vadd.f32 %v1187, %v1248
        %v1296 = vadd.f32 %v1187, %v1252
        %v1297 = vadd.f32 %v1192, %v1248
        %v1298 = vadd.f32 %v1192, %v1252
        %v1299 = vadd.f32 %v1197, %v1248
        %v1300 = vadd.f32 %v1197, %v1252
        %v1301 = vadd.f32 %v1202, %v1248
        %v1302 = vadd.f32 %v1202, %v1252
        %v1303 = vadd.f32 %v1207, %v1248
        %v1304 = vadd.f32 %v1207, %v1252
        %v1305 = vadd.f32 %v1212, %v1248
        %v1306 = vadd.f32 %v1212, %v1252
        %v1307 = vadd.f32 %v1217, %v1248
        %v1308 = vadd.f32 %v1217, %v1252
        %v1309 = vadd.f32 %v1222, %v1248
        %v1310 = vadd.f32 %v1222, %v1252
        %v1311 = vadd.f32 %v1227, %v1248
        %v1312 = vadd.f32 %v1227, %v1252
        %v1313 = vadd.f32 %v1232, %v1248
        %v1314 = vadd.f32 %v1232, %v1252
        %v1315 = vadd.f32 %v1237, %v1248
        %v1316 = vadd.f32 %v1237, %v1252
        %v1317 = vadd.f32 %v1242, %v1248
        %v1318 = vadd.f32 %v1242, %v1252
        %v1319 = vmul.f32 %v861, 2.0
        %v1320 = vmul.f32 %v863, 2.0
        %v1321 = vmul.f32 %v867, 2.0
        %v1322 = vmul.f32 %v869, 2.0
        %v1323 = vmul.f32 %v873, 2.0
        %v1324 = vmul.f32 %v875, 2.0
        %v1325 = vmul.f32 %v879, 2.0
        %v1326 = vmul.f32 %v881, 2.0
        %v1327 = vmul.f32 %v885, 2.0
        %v1328 = vmul.f32 %v887, 2.0
        %v1329 = vmul.f32 %v891, 2.0
        %v1330 = vmul.f32 %v893, 2.0
        %v1331 = vmul.f32 %v897, 2.0
        %v1332 = vmul.f32 %v899, 2.0
        %v1333 = vmul.f32 %v903, 2.0
        %v1334 = vmul.f32 %v905, 2.0
        %v1335 = vmul.f32 %v909, 2.0
        %v1336 = vmul.f32 %v911, 2.0
        %v1337 = vmul.f32 %v915, 2.0
        %v1338 = vmul.f32 %v917, 2.0
        %v1339 = vmul.f32 %v921, 2.0
        %v1340 = vmul.f32 %v923, 2.0
        %v1341 = vmul.f32 %v927, 2.0
        %v1342 = vmul.f32 %v929, 2.0
        %v1343 = vmul.f32 %v933, 2.0
        %v1344 = vmul.f32 %v935, 2.0
        %v1345 = vmul.f32 %v939, 2.0
        %v1346 = vmul.f32 %v941, 2.0
        %v1347 = vmul.f32 %v945, 2.0
        %v1348 = vmul.f32 %v947, 2.0
        %v1349 = vmul.f32 %v951, 2.0
        %v1350 = vmul.f32 %v953, 2.0
        %v1351 = vmul.f32 %v957, 2.0
        %v1352 = vmul.f32 %v959, 2.0
        %v1353 = vmul.f32 %v963, 2.0
        %v1354 = vmul.f32 %v965, 2.0
        %v1355 = vmul.f32 %v969, 2.0
        %v1356 = vmul.f32 %v971, 2.0
        %v1357 = vmul.f32 %v975, 2.0
        %v1358 = vmul.f32 %v977, 2.0
        %v1359 = vmul.f32 %v981, 2.0
        %v1360 = vmul.f32 %v983, 2.0
        %v1361 = vmul.f32 %v987, 2.0
        %v1362 = vmul.f32 %v989, 2.0
        %v1363 = vmul.f32 %v993, 2.0
        %v1364 = vmul.f32 %v995, 2.0
        %v1365 = vmul.f32 %v999, 2.0
        %v1366 = vmul.f32 %v1001, 2.0
        %v1367 = vmul.f32 %v1005, 2.0
        %v1368 = vmul.f32 %v1007, 2.0
        %v1369 = vmul.f32 %v1011, 2.0
        %v1370 = vmul.f32 %v1013, 2.0
        %v1371 = vmul.f32 %v1017, 2.0
        %v1372 = vmul.f32 %v1019, 2.0
        %v1373 = vmul.f32 %v1023, 2.0
        %v1374 = vmul.f32 %v1025, 2.0
        %v1375 = vmul.f32 %v1029, 2.0
        %v1376 = vmul.f32 %v1031, 2.0
        %v1377 = vmul.f32 %v1035, 2.0
        %v1378 = vmul.f32 %v1037, 2.0
        %v1379 = vmul.f32 %v1041, 2.0
        %v1380 = vmul.f32 %v1043, 2.0
        %v1381 = vmul.f32 %v1047, 2.0
        %v1382 = vmul.f32 %v1049, 2.0
        %v1383 = vsub.f32 %v1255, %v1319
        %v1384 = vsub.f32 %v1256, %v1320
        %v1385 = vsub.f32 %v1257, %v1321
        %v1386 = vsub.f32 %v1258, %v1322
        %v1387 = vsub.f32 %v1259, %v1323
        %v1388 = vsub.f32 %v1260, %v1324
        %v1389 = vsub.f32 %v1261, %v1325
        %v1390 = vsub.f32 %v1262, %v1326
        %v1391 = vsub.f32 %v1263, %v1327
        %v1392 = vsub.f32 %v1264, %v1328
        %v1393 = vsub.f32 %v1265, %v1329
        %v1394 = vsub.f32 %v1266, %v1330
        %v1395 = vsub.f32 %v1267, %v1331
        %v1396 = vsub.f32 %v1268, %v1332
        %v1397 = vsub.f32 %v1269, %v1333
        %v1398 = vsub.f32 %v1270, %v1334
        %v1399 = vsub.f32 %v1271, %v1335
        %v1400 = vsub.f32 %v1272, %v1336
        %v1401 = vsub.f32 %v1273, %v1337
        %v1402 = vsub.f32 %v1274, %v1338
        %v1403 = vsub.f32 %v1275, %v1339
        %v1404 = vsub.f32 %v1276, %v1340
        %v1405 = vsub.f32 %v1277, %v1341
        %v1406 = vsub.f32 %v1278, %v1342
        %v1407 = vsub.f32 %v1279, %v1343
        %v1408 = vsub.f32 %v1280, %v1344
        %v1409 = vsub.f32 %v1281, %v1345
        %v1410 = vsub.f32 %v1282, %v1346
        %v1411 = vsub.f32 %v1283, %v1347
        %v1412 = vsub.f32 %v1284, %v1348
        %v1413 = vsub.f32 %v1285, %v1349
        %v1414 = vsub.f32 %v1286, %v1350
        %v1415 = vsub.f32 %v1287, %v1351
        %v1416 = vsub.f32 %v1288, %v1352
        %v1417 = vsub.f32 %v1289, %v1353
        %v1418 = vsub.f32 %v1290, %v1354
        %v1419 = vsub.f32 %v1291, %v1355
        %v1420 = vsub.f32 %v1292, %v1356
        %v1421 = vsub.f32 %v1293, %v1357
        %v1422 = vsub.f32 %v1294, %v1358
        %v1423 = vsub.f32 %v1295, %v1359
        %v1424 = vsub.f32 %v1296, %v1360
        %v1425 = vsub.f32 %v1297, %v1361
        %v1426 = vsub.f32 %v1298, %v1362
        %v1427 = vsub.f32 %v1299, %v1363
        %v1428 = vsub.f32 %v1300, %v1364
        %v1429 = vsub.f32 %v1301, %v1365
        %v1430 = vsub.f32 %v1302, %v1366
        %v1431 = vsub.f32 %v1303, %v1367
        %v1432 = vsub.f32 %v1304, %v1368
        %v1433 = vsub.f32 %v1305, %v1369
        %v1434 = vsub.f32 %v1306, %v1370
        %v1435 = vsub.f32 %v1307, %v1371
        %v1436 = vsub.f32 %v1308, %v1372
        %v1437 = vsub.f32 %v1309, %v1373
        %v1438 = vsub.f32 %v1310, %v1374
        %v1439 = vsub.f32 %v1311, %v1375
        %v1440 = vsub.f32 %v1312, %v1376
        %v1441 = vsub.f32 %v1313, %v1377
        %v1442 = vsub.f32 %v1314, %v1378
        %v1443 = vsub.f32 %v1315, %v1379
        %v1444 = vsub.f32 %v1316, %v1380
        %v1445 = vsub.f32 %v1317, %v1381
        %v1446 = vsub.f32 %v1318, %v1382
        %v1447 = vmax.f32 %v1383, 0.0
        %v1448 = vmax.f32 %v1384, 0.0
        %v1449 = vmax.f32 %v1385, 0.0
        %v1450 = vmax.f32 %v1386, 0.0
        %v1451 = vmax.f32 %v1387, 0.0
        %v1452 = vmax.f32 %v1388, 0.0
        %v1453 = vmax.f32 %v1389, 0.0
        %v1454 = vmax.f32 %v1390, 0.0
        %v1455 = vmax.f32 %v1391, 0.0
        %v1456 = vmax.f32 %v1392, 0.0
        %v1457 = vmax.f32 %v1393, 0.0
        %v1458 = vmax.f32 %v1394, 0.0
        %v1459 = vmax.f32 %v1395, 0.0
        %v1460 = vmax.f32 %v1396, 0.0
        %v1461 = vmax.f32 %v1397, 0.0
        %v1462 = vmax.f32 %v1398, 0.0
        %v1463 = vmax.f32 %v1399, 0.0
        %v1464 = vmax.f32 %v1400, 0.0
        %v1465 = vmax.f32 %v1401, 0.0
        %v1466 = vmax.f32 %v1402, 0.0
        %v1467 = vmax.f32 %v1403, 0.0
        %v1468 = vmax.f32 %v1404, 0.0
        %v1469 = vmax.f32 %v1405, 0.0
        %v1470 = vmax.f32 %v1406, 0.0
        %v1471 = vmax.f32 %v1407, 0.0
        %v1472 = vmax.f32 %v1408, 0.0
        %v1473 = vmax.f32 %v1409, 0.0
        %v1474 = vmax.f32 %v1410, 0.0
        %v1475 = vmax.f32 %v1411, 0.0
        %v1476 = vmax.f32 %v1412, 0.0
        %v1477 = vmax.f32 %v1413, 0.0
        %v1478 = vmax.f32 %v1414, 0.0
        %v1479 = vmax.f32 %v1415, 0.0
        %v1480 = vmax.f32 %v1416, 0.0
        %v1481 = vmax.f32 %v1417, 0.0
        %v1482 = vmax.f32 %v1418, 0.0
        %v1483 = vmax.f32 %v1419, 0.0
        %v1484 = vmax.f32 %v1420, 0.0
        %v1485 = vmax.f32 %v1421, 0.0
        %v1486 = vmax.f32 %v1422, 0.0
        %v1487 = vmax.f32 %v1423, 0.0
        %v1488 = vmax.f32 %v1424, 0.0
        %v1489 = vmax.f32 %v1425, 0.0
        %v1490 = vmax.f32 %v1426, 0.0
        %v1491 = vmax.f32 %v1427, 0.0
        %v1492 = vmax.f32 %v1428, 0.0
        %v1493 = vmax.f32 %v1429, 0.0
        %v1494 = vmax.f32 %v1430, 0.0
        %v1495 = vmax.f32 %v1431, 0.0
        %v1496 = vmax.f32 %v1432, 0.0
        %v1497 = vmax.f32 %v1433, 0.0
        %v1498 = vmax.f32 %v1434, 0.0
        %v1499 = vmax.f32 %v1435, 0.0
        %v1500 = vmax.f32 %v1436, 0.0
        %v1501 = vmax.f32 %v1437, 0.0
        %v1502 = vmax.f32 %v1438, 0.0
        %v1503 = vmax.f32 %v1439, 0.0
        %v1504 = vmax.f32 %v1440, 0.0
        %v1505 = vmax.f32 %v1441, 0.0
        %v1506 = vmax.f32 %v1442, 0.0
        %v1507 = vmax.f32 %v1443, 0.0
        %v1508 = vmax.f32 %v1444, 0.0
        %v1509 = vmax.f32 %v1445, 0.0
        %v1510 = vmax.f32 %v1446, 0.0
        %v1511 = vrsqrt.pop %v1447
        %v1512 = vmul.f32 %v1447, %v1511
        %vm1513 = vcmp.eq.f32.partialorder %v1447, inf
        %v1514 = vsel %vm1513, %v1447, %v1512
        %vm1515 = vcmp.eq.f32.partialorder %v1447, 0.0
        %v1516 = vand.u32 %v1447, 2147483648
        %v1517 = vsel %vm1515, %v1516, %v1514
        %v1518 = vrsqrt.pop %v1448
        %v1519 = vmul.f32 %v1448, %v1518
        %vm1520 = vcmp.eq.f32.partialorder %v1448, inf
        %v1521 = vsel %vm1520, %v1448, %v1519
        %vm1522 = vcmp.eq.f32.partialorder %v1448, 0.0
        %v1523 = vand.u32 %v1448, 2147483648
        %v1524 = vsel %vm1522, %v1523, %v1521
        %v1525 = vrsqrt.pop %v1449
        %v1526 = vmul.f32 %v1449, %v1525
        %vm1527 = vcmp.eq.f32.partialorder %v1449, inf
        %v1528 = vsel %vm1527, %v1449, %v1526
        %vm1529 = vcmp.eq.f32.partialorder %v1449, 0.0
        %v1530 = vand.u32 %v1449, 2147483648
        %v1531 = vsel %vm1529, %v1530, %v1528
        %v1532 = vrsqrt.pop %v1450
        %v1533 = vmul.f32 %v1450, %v1532
        %vm1534 = vcmp.eq.f32.partialorder %v1450, inf
        %v1535 = vsel %vm1534, %v1450, %v1533
        %vm1536 = vcmp.eq.f32.partialorder %v1450, 0.0
        %v1537 = vand.u32 %v1450, 2147483648
        %v1538 = vsel %vm1536, %v1537, %v1535
        %v1539 = vrsqrt.pop %v1451
        %v1540 = vmul.f32 %v1451, %v1539
        %vm1541 = vcmp.eq.f32.partialorder %v1451, inf
        %v1542 = vsel %vm1541, %v1451, %v1540
        %vm1543 = vcmp.eq.f32.partialorder %v1451, 0.0
        %v1544 = vand.u32 %v1451, 2147483648
        %v1545 = vsel %vm1543, %v1544, %v1542
        %v1546 = vrsqrt.pop %v1452
        %v1547 = vmul.f32 %v1452, %v1546
        %vm1548 = vcmp.eq.f32.partialorder %v1452, inf
        %v1549 = vsel %vm1548, %v1452, %v1547
        %vm1550 = vcmp.eq.f32.partialorder %v1452, 0.0
        %v1551 = vand.u32 %v1452, 2147483648
        %v1552 = vsel %vm1550, %v1551, %v1549
        %v1553 = vrsqrt.pop %v1453
        %v1554 = vmul.f32 %v1453, %v1553
        %vm1555 = vcmp.eq.f32.partialorder %v1453, inf
        %v1556 = vsel %vm1555, %v1453, %v1554
        %vm1557 = vcmp.eq.f32.partialorder %v1453, 0.0
        %v1558 = vand.u32 %v1453, 2147483648
        %v1559 = vsel %vm1557, %v1558, %v1556
        %v1560 = vrsqrt.pop %v1454
        %v1561 = vmul.f32 %v1454, %v1560
        %vm1562 = vcmp.eq.f32.partialorder %v1454, inf
        %v1563 = vsel %vm1562, %v1454, %v1561
        %vm1564 = vcmp.eq.f32.partialorder %v1454, 0.0
        %v1565 = vand.u32 %v1454, 2147483648
        %v1566 = vsel %vm1564, %v1565, %v1563
        %v1567 = vrsqrt.pop %v1455
        %v1568 = vmul.f32 %v1455, %v1567
        %vm1569 = vcmp.eq.f32.partialorder %v1455, inf
        %v1570 = vsel %vm1569, %v1455, %v1568
        %vm1571 = vcmp.eq.f32.partialorder %v1455, 0.0
        %v1572 = vand.u32 %v1455, 2147483648
        %v1573 = vsel %vm1571, %v1572, %v1570
        %v1574 = vrsqrt.pop %v1456
        %v1575 = vmul.f32 %v1456, %v1574
        %vm1576 = vcmp.eq.f32.partialorder %v1456, inf
        %v1577 = vsel %vm1576, %v1456, %v1575
        %vm1578 = vcmp.eq.f32.partialorder %v1456, 0.0
        %v1579 = vand.u32 %v1456, 2147483648
        %v1580 = vsel %vm1578, %v1579, %v1577
        %v1581 = vrsqrt.pop %v1457
        %v1582 = vmul.f32 %v1457, %v1581
        %vm1583 = vcmp.eq.f32.partialorder %v1457, inf
        %v1584 = vsel %vm1583, %v1457, %v1582
        %vm1585 = vcmp.eq.f32.partialorder %v1457, 0.0
        %v1586 = vand.u32 %v1457, 2147483648
        %v1587 = vsel %vm1585, %v1586, %v1584
        %v1588 = vrsqrt.pop %v1458
        %v1589 = vmul.f32 %v1458, %v1588
        %vm1590 = vcmp.eq.f32.partialorder %v1458, inf
        %v1591 = vsel %vm1590, %v1458, %v1589
        %vm1592 = vcmp.eq.f32.partialorder %v1458, 0.0
        %v1593 = vand.u32 %v1458, 2147483648
        %v1594 = vsel %vm1592, %v1593, %v1591
        %v1595 = vrsqrt.pop %v1459
        %v1596 = vmul.f32 %v1459, %v1595
        %vm1597 = vcmp.eq.f32.partialorder %v1459, inf
        %v1598 = vsel %vm1597, %v1459, %v1596
        %vm1599 = vcmp.eq.f32.partialorder %v1459, 0.0
        %v1600 = vand.u32 %v1459, 2147483648
        %v1601 = vsel %vm1599, %v1600, %v1598
        %v1602 = vrsqrt.pop %v1460
        %v1603 = vmul.f32 %v1460, %v1602
        %vm1604 = vcmp.eq.f32.partialorder %v1460, inf
        %v1605 = vsel %vm1604, %v1460, %v1603
        %vm1606 = vcmp.eq.f32.partialorder %v1460, 0.0
        %v1607 = vand.u32 %v1460, 2147483648
        %v1608 = vsel %vm1606, %v1607, %v1605
        %v1609 = vrsqrt.pop %v1461
        %v1610 = vmul.f32 %v1461, %v1609
        %vm1611 = vcmp.eq.f32.partialorder %v1461, inf
        %v1612 = vsel %vm1611, %v1461, %v1610
        %vm1613 = vcmp.eq.f32.partialorder %v1461, 0.0
        %v1614 = vand.u32 %v1461, 2147483648
        %v1615 = vsel %vm1613, %v1614, %v1612
        %v1616 = vrsqrt.pop %v1462
        %v1617 = vmul.f32 %v1462, %v1616
        %vm1618 = vcmp.eq.f32.partialorder %v1462, inf
        %v1619 = vsel %vm1618, %v1462, %v1617
        %vm1620 = vcmp.eq.f32.partialorder %v1462, 0.0
        %v1621 = vand.u32 %v1462, 2147483648
        %v1622 = vsel %vm1620, %v1621, %v1619
        %v1623 = vrsqrt.pop %v1463
        %v1624 = vmul.f32 %v1463, %v1623
        %vm1625 = vcmp.eq.f32.partialorder %v1463, inf
        %v1626 = vsel %vm1625, %v1463, %v1624
        %vm1627 = vcmp.eq.f32.partialorder %v1463, 0.0
        %v1628 = vand.u32 %v1463, 2147483648
        %v1629 = vsel %vm1627, %v1628, %v1626
        %v1630 = vrsqrt.pop %v1464
        %v1631 = vmul.f32 %v1464, %v1630
        %vm1632 = vcmp.eq.f32.partialorder %v1464, inf
        %v1633 = vsel %vm1632, %v1464, %v1631
        %vm1634 = vcmp.eq.f32.partialorder %v1464, 0.0
        %v1635 = vand.u32 %v1464, 2147483648
        %v1636 = vsel %vm1634, %v1635, %v1633
        %v1637 = vrsqrt.pop %v1465
        %v1638 = vmul.f32 %v1465, %v1637
        %vm1639 = vcmp.eq.f32.partialorder %v1465, inf
        %v1640 = vsel %vm1639, %v1465, %v1638
        %vm1641 = vcmp.eq.f32.partialorder %v1465, 0.0
        %v1642 = vand.u32 %v1465, 2147483648
        %v1643 = vsel %vm1641, %v1642, %v1640
        %v1644 = vrsqrt.pop %v1466
        %v1645 = vmul.f32 %v1466, %v1644
        %vm1646 = vcmp.eq.f32.partialorder %v1466, inf
        %v1647 = vsel %vm1646, %v1466, %v1645
        %vm1648 = vcmp.eq.f32.partialorder %v1466, 0.0
        %v1649 = vand.u32 %v1466, 2147483648
        %v1650 = vsel %vm1648, %v1649, %v1647
        %v1651 = vrsqrt.pop %v1467
        %v1652 = vmul.f32 %v1467, %v1651
        %vm1653 = vcmp.eq.f32.partialorder %v1467, inf
        %v1654 = vsel %vm1653, %v1467, %v1652
        %vm1655 = vcmp.eq.f32.partialorder %v1467, 0.0
        %v1656 = vand.u32 %v1467, 2147483648
        %v1657 = vsel %vm1655, %v1656, %v1654
        %v1658 = vrsqrt.pop %v1468
        %v1659 = vmul.f32 %v1468, %v1658
        %vm1660 = vcmp.eq.f32.partialorder %v1468, inf
        %v1661 = vsel %vm1660, %v1468, %v1659
        %vm1662 = vcmp.eq.f32.partialorder %v1468, 0.0
        %v1663 = vand.u32 %v1468, 2147483648
        %v1664 = vsel %vm1662, %v1663, %v1661
        %v1665 = vrsqrt.pop %v1469
        %v1666 = vmul.f32 %v1469, %v1665
        %vm1667 = vcmp.eq.f32.partialorder %v1469, inf
        %v1668 = vsel %vm1667, %v1469, %v1666
        %vm1669 = vcmp.eq.f32.partialorder %v1469, 0.0
        %v1670 = vand.u32 %v1469, 2147483648
        %v1671 = vsel %vm1669, %v1670, %v1668
        %v1672 = vrsqrt.pop %v1470
        %v1673 = vmul.f32 %v1470, %v1672
        %vm1674 = vcmp.eq.f32.partialorder %v1470, inf
        %v1675 = vsel %vm1674, %v1470, %v1673
        %vm1676 = vcmp.eq.f32.partialorder %v1470, 0.0
        %v1677 = vand.u32 %v1470, 2147483648
        %v1678 = vsel %vm1676, %v1677, %v1675
        %v1679 = vrsqrt.pop %v1471
        %v1680 = vmul.f32 %v1471, %v1679
        %vm1681 = vcmp.eq.f32.partialorder %v1471, inf
        %v1682 = vsel %vm1681, %v1471, %v1680
        %vm1683 = vcmp.eq.f32.partialorder %v1471, 0.0
        %v1684 = vand.u32 %v1471, 2147483648
        %v1685 = vsel %vm1683, %v1684, %v1682
        %v1686 = vrsqrt.pop %v1472
        %v1687 = vmul.f32 %v1472, %v1686
        %vm1688 = vcmp.eq.f32.partialorder %v1472, inf
        %v1689 = vsel %vm1688, %v1472, %v1687
        %vm1690 = vcmp.eq.f32.partialorder %v1472, 0.0
        %v1691 = vand.u32 %v1472, 2147483648
        %v1692 = vsel %vm1690, %v1691, %v1689
        %v1693 = vrsqrt.pop %v1473
        %v1694 = vmul.f32 %v1473, %v1693
        %vm1695 = vcmp.eq.f32.partialorder %v1473, inf
        %v1696 = vsel %vm1695, %v1473, %v1694
        %vm1697 = vcmp.eq.f32.partialorder %v1473, 0.0
        %v1698 = vand.u32 %v1473, 2147483648
        %v1699 = vsel %vm1697, %v1698, %v1696
        %v1700 = vrsqrt.pop %v1474
        %v1701 = vmul.f32 %v1474, %v1700
        %vm1702 = vcmp.eq.f32.partialorder %v1474, inf
        %v1703 = vsel %vm1702, %v1474, %v1701
        %vm1704 = vcmp.eq.f32.partialorder %v1474, 0.0
        %v1705 = vand.u32 %v1474, 2147483648
        %v1706 = vsel %vm1704, %v1705, %v1703
        %v1707 = vrsqrt.pop %v1475
        %v1708 = vmul.f32 %v1475, %v1707
        %vm1709 = vcmp.eq.f32.partialorder %v1475, inf
        %v1710 = vsel %vm1709, %v1475, %v1708
        %vm1711 = vcmp.eq.f32.partialorder %v1475, 0.0
        %v1712 = vand.u32 %v1475, 2147483648
        %v1713 = vsel %vm1711, %v1712, %v1710
        %v1714 = vrsqrt.pop %v1476
        %v1715 = vmul.f32 %v1476, %v1714
        %vm1716 = vcmp.eq.f32.partialorder %v1476, inf
        %v1717 = vsel %vm1716, %v1476, %v1715
        %vm1718 = vcmp.eq.f32.partialorder %v1476, 0.0
        %v1719 = vand.u32 %v1476, 2147483648
        %v1720 = vsel %vm1718, %v1719, %v1717
        %v1721 = vrsqrt.pop %v1477
        %v1722 = vmul.f32 %v1477, %v1721
        %vm1723 = vcmp.eq.f32.partialorder %v1477, inf
        %v1724 = vsel %vm1723, %v1477, %v1722
        %vm1725 = vcmp.eq.f32.partialorder %v1477, 0.0
        %v1726 = vand.u32 %v1477, 2147483648
        %v1727 = vsel %vm1725, %v1726, %v1724
        %v1728 = vrsqrt.pop %v1478
        %v1729 = vmul.f32 %v1478, %v1728
        %vm1730 = vcmp.eq.f32.partialorder %v1478, inf
        %v1731 = vsel %vm1730, %v1478, %v1729
        %vm1732 = vcmp.eq.f32.partialorder %v1478, 0.0
        %v1733 = vand.u32 %v1478, 2147483648
        %v1734 = vsel %vm1732, %v1733, %v1731
        %v1735 = vrsqrt.pop %v1479
        %v1736 = vmul.f32 %v1479, %v1735
        %vm1737 = vcmp.eq.f32.partialorder %v1479, inf
        %v1738 = vsel %vm1737, %v1479, %v1736
        %vm1739 = vcmp.eq.f32.partialorder %v1479, 0.0
        %v1740 = vand.u32 %v1479, 2147483648
        %v1741 = vsel %vm1739, %v1740, %v1738
        %v1742 = vrsqrt.pop %v1480
        %v1743 = vmul.f32 %v1480, %v1742
        %vm1744 = vcmp.eq.f32.partialorder %v1480, inf
        %v1745 = vsel %vm1744, %v1480, %v1743
        %vm1746 = vcmp.eq.f32.partialorder %v1480, 0.0
        %v1747 = vand.u32 %v1480, 2147483648
        %v1748 = vsel %vm1746, %v1747, %v1745
        %v1749 = vrsqrt.pop %v1481
        %v1750 = vmul.f32 %v1481, %v1749
        %vm1751 = vcmp.eq.f32.partialorder %v1481, inf
        %v1752 = vsel %vm1751, %v1481, %v1750
        %vm1753 = vcmp.eq.f32.partialorder %v1481, 0.0
        %v1754 = vand.u32 %v1481, 2147483648
        %v1755 = vsel %vm1753, %v1754, %v1752
        %v1756 = vrsqrt.pop %v1482
        %v1757 = vmul.f32 %v1482, %v1756
        %vm1758 = vcmp.eq.f32.partialorder %v1482, inf
        %v1759 = vsel %vm1758, %v1482, %v1757
        %vm1760 = vcmp.eq.f32.partialorder %v1482, 0.0
        %v1761 = vand.u32 %v1482, 2147483648
        %v1762 = vsel %vm1760, %v1761, %v1759
        %v1763 = vrsqrt.pop %v1483
        %v1764 = vmul.f32 %v1483, %v1763
        %vm1765 = vcmp.eq.f32.partialorder %v1483, inf
        %v1766 = vsel %vm1765, %v1483, %v1764
        %vm1767 = vcmp.eq.f32.partialorder %v1483, 0.0
        %v1768 = vand.u32 %v1483, 2147483648
        %v1769 = vsel %vm1767, %v1768, %v1766
        %v1770 = vrsqrt.pop %v1484
        %v1771 = vmul.f32 %v1484, %v1770
        %vm1772 = vcmp.eq.f32.partialorder %v1484, inf
        %v1773 = vsel %vm1772, %v1484, %v1771
        %vm1774 = vcmp.eq.f32.partialorder %v1484, 0.0
        %v1775 = vand.u32 %v1484, 2147483648
        %v1776 = vsel %vm1774, %v1775, %v1773
        %v1777 = vrsqrt.pop %v1485
        %v1778 = vmul.f32 %v1485, %v1777
        %vm1779 = vcmp.eq.f32.partialorder %v1485, inf
        %v1780 = vsel %vm1779, %v1485, %v1778
        %vm1781 = vcmp.eq.f32.partialorder %v1485, 0.0
        %v1782 = vand.u32 %v1485, 2147483648
        %v1783 = vsel %vm1781, %v1782, %v1780
        %v1784 = vrsqrt.pop %v1486
        %v1785 = vmul.f32 %v1486, %v1784
        %vm1786 = vcmp.eq.f32.partialorder %v1486, inf
        %v1787 = vsel %vm1786, %v1486, %v1785
        %vm1788 = vcmp.eq.f32.partialorder %v1486, 0.0
        %v1789 = vand.u32 %v1486, 2147483648
        %v1790 = vsel %vm1788, %v1789, %v1787
        %v1791 = vrsqrt.pop %v1487
        %v1792 = vmul.f32 %v1487, %v1791
        %vm1793 = vcmp.eq.f32.partialorder %v1487, inf
        %v1794 = vsel %vm1793, %v1487, %v1792
        %vm1795 = vcmp.eq.f32.partialorder %v1487, 0.0
        %v1796 = vand.u32 %v1487, 2147483648
        %v1797 = vsel %vm1795, %v1796, %v1794
        %v1798 = vrsqrt.pop %v1488
        %v1799 = vmul.f32 %v1488, %v1798
        %vm1800 = vcmp.eq.f32.partialorder %v1488, inf
        %v1801 = vsel %vm1800, %v1488, %v1799
        %vm1802 = vcmp.eq.f32.partialorder %v1488, 0.0
        %v1803 = vand.u32 %v1488, 2147483648
        %v1804 = vsel %vm1802, %v1803, %v1801
        %v1805 = vrsqrt.pop %v1489
        %v1806 = vmul.f32 %v1489, %v1805
        %vm1807 = vcmp.eq.f32.partialorder %v1489, inf
        %v1808 = vsel %vm1807, %v1489, %v1806
        %vm1809 = vcmp.eq.f32.partialorder %v1489, 0.0
        %v1810 = vand.u32 %v1489, 2147483648
        %v1811 = vsel %vm1809, %v1810, %v1808
        %v1812 = vrsqrt.pop %v1490
        %v1813 = vmul.f32 %v1490, %v1812
        %vm1814 = vcmp.eq.f32.partialorder %v1490, inf
        %v1815 = vsel %vm1814, %v1490, %v1813
        %vm1816 = vcmp.eq.f32.partialorder %v1490, 0.0
        %v1817 = vand.u32 %v1490, 2147483648
        %v1818 = vsel %vm1816, %v1817, %v1815
        %v1819 = vrsqrt.pop %v1491
        %v1820 = vmul.f32 %v1491, %v1819
        %vm1821 = vcmp.eq.f32.partialorder %v1491, inf
        %v1822 = vsel %vm1821, %v1491, %v1820
        %vm1823 = vcmp.eq.f32.partialorder %v1491, 0.0
        %v1824 = vand.u32 %v1491, 2147483648
        %v1825 = vsel %vm1823, %v1824, %v1822
        %v1826 = vrsqrt.pop %v1492
        %v1827 = vmul.f32 %v1492, %v1826
        %vm1828 = vcmp.eq.f32.partialorder %v1492, inf
        %v1829 = vsel %vm1828, %v1492, %v1827
        %vm1830 = vcmp.eq.f32.partialorder %v1492, 0.0
        %v1831 = vand.u32 %v1492, 2147483648
        %v1832 = vsel %vm1830, %v1831, %v1829
        %v1833 = vrsqrt.pop %v1493
        %v1834 = vmul.f32 %v1493, %v1833
        %vm1835 = vcmp.eq.f32.partialorder %v1493, inf
        %v1836 = vsel %vm1835, %v1493, %v1834
        %vm1837 = vcmp.eq.f32.partialorder %v1493, 0.0
        %v1838 = vand.u32 %v1493, 2147483648
        %v1839 = vsel %vm1837, %v1838, %v1836
        %v1840 = vrsqrt.pop %v1494
        %v1841 = vmul.f32 %v1494, %v1840
        %vm1842 = vcmp.eq.f32.partialorder %v1494, inf
        %v1843 = vsel %vm1842, %v1494, %v1841
        %vm1844 = vcmp.eq.f32.partialorder %v1494, 0.0
        %v1845 = vand.u32 %v1494, 2147483648
        %v1846 = vsel %vm1844, %v1845, %v1843
        %v1847 = vrsqrt.pop %v1495
        %v1848 = vmul.f32 %v1495, %v1847
        %vm1849 = vcmp.eq.f32.partialorder %v1495, inf
        %v1850 = vsel %vm1849, %v1495, %v1848
        %vm1851 = vcmp.eq.f32.partialorder %v1495, 0.0
        %v1852 = vand.u32 %v1495, 2147483648
        %v1853 = vsel %vm1851, %v1852, %v1850
        %v1854 = vrsqrt.pop %v1496
        %v1855 = vmul.f32 %v1496, %v1854
        %vm1856 = vcmp.eq.f32.partialorder %v1496, inf
        %v1857 = vsel %vm1856, %v1496, %v1855
        %vm1858 = vcmp.eq.f32.partialorder %v1496, 0.0
        %v1859 = vand.u32 %v1496, 2147483648
        %v1860 = vsel %vm1858, %v1859, %v1857
        %v1861 = vrsqrt.pop %v1497
        %v1862 = vmul.f32 %v1497, %v1861
        %vm1863 = vcmp.eq.f32.partialorder %v1497, inf
        %v1864 = vsel %vm1863, %v1497, %v1862
        %vm1865 = vcmp.eq.f32.partialorder %v1497, 0.0
        %v1866 = vand.u32 %v1497, 2147483648
        %v1867 = vsel %vm1865, %v1866, %v1864
        %v1868 = vrsqrt.pop %v1498
        %v1869 = vmul.f32 %v1498, %v1868
        %vm1870 = vcmp.eq.f32.partialorder %v1498, inf
        %v1871 = vsel %vm1870, %v1498, %v1869
        %vm1872 = vcmp.eq.f32.partialorder %v1498, 0.0
        %v1873 = vand.u32 %v1498, 2147483648
        %v1874 = vsel %vm1872, %v1873, %v1871
        %v1875 = vrsqrt.pop %v1499
        %v1876 = vmul.f32 %v1499, %v1875
        %vm1877 = vcmp.eq.f32.partialorder %v1499, inf
        %v1878 = vsel %vm1877, %v1499, %v1876
        %vm1879 = vcmp.eq.f32.partialorder %v1499, 0.0
        %v1880 = vand.u32 %v1499, 2147483648
        %v1881 = vsel %vm1879, %v1880, %v1878
        %v1882 = vrsqrt.pop %v1500
        %v1883 = vmul.f32 %v1500, %v1882
        %vm1884 = vcmp.eq.f32.partialorder %v1500, inf
        %v1885 = vsel %vm1884, %v1500, %v1883
        %vm1886 = vcmp.eq.f32.partialorder %v1500, 0.0
        %v1887 = vand.u32 %v1500, 2147483648
        %v1888 = vsel %vm1886, %v1887, %v1885
        %v1889 = vrsqrt.pop %v1501
        %v1890 = vmul.f32 %v1501, %v1889
        %vm1891 = vcmp.eq.f32.partialorder %v1501, inf
        %v1892 = vsel %vm1891, %v1501, %v1890
        %vm1893 = vcmp.eq.f32.partialorder %v1501, 0.0
        %v1894 = vand.u32 %v1501, 2147483648
        %v1895 = vsel %vm1893, %v1894, %v1892
        %v1896 = vrsqrt.pop %v1502
        %v1897 = vmul.f32 %v1502, %v1896
        %vm1898 = vcmp.eq.f32.partialorder %v1502, inf
        %v1899 = vsel %vm1898, %v1502, %v1897
        %vm1900 = vcmp.eq.f32.partialorder %v1502, 0.0
        %v1901 = vand.u32 %v1502, 2147483648
        %v1902 = vsel %vm1900, %v1901, %v1899
        %v1903 = vrsqrt.pop %v1503
        %v1904 = vmul.f32 %v1503, %v1903
        %vm1905 = vcmp.eq.f32.partialorder %v1503, inf
        %v1906 = vsel %vm1905, %v1503, %v1904
        %vm1907 = vcmp.eq.f32.partialorder %v1503, 0.0
        %v1908 = vand.u32 %v1503, 2147483648
        %v1909 = vsel %vm1907, %v1908, %v1906
        %v1910 = vrsqrt.pop %v1504
        %v1911 = vmul.f32 %v1504, %v1910
        %vm1912 = vcmp.eq.f32.partialorder %v1504, inf
        %v1913 = vsel %vm1912, %v1504, %v1911
        %vm1914 = vcmp.eq.f32.partialorder %v1504, 0.0
        %v1915 = vand.u32 %v1504, 2147483648
        %v1916 = vsel %vm1914, %v1915, %v1913
        %v1917 = vrsqrt.pop %v1505
        %v1918 = vmul.f32 %v1505, %v1917
        %vm1919 = vcmp.eq.f32.partialorder %v1505, inf
        %v1920 = vsel %vm1919, %v1505, %v1918
        %vm1921 = vcmp.eq.f32.partialorder %v1505, 0.0
        %v1922 = vand.u32 %v1505, 2147483648
        %v1923 = vsel %vm1921, %v1922, %v1920
        %v1924 = vrsqrt.pop %v1506
        %v1925 = vmul.f32 %v1506, %v1924
        %vm1926 = vcmp.eq.f32.partialorder %v1506, inf
        %v1927 = vsel %vm1926, %v1506, %v1925
        %vm1928 = vcmp.eq.f32.partialorder %v1506, 0.0
        %v1929 = vand.u32 %v1506, 2147483648
        %v1930 = vsel %vm1928, %v1929, %v1927
        %v1931 = vrsqrt.pop %v1507
        %v1932 = vmul.f32 %v1507, %v1931
        %vm1933 = vcmp.eq.f32.partialorder %v1507, inf
        %v1934 = vsel %vm1933, %v1507, %v1932
        %vm1935 = vcmp.eq.f32.partialorder %v1507, 0.0
        %v1936 = vand.u32 %v1507, 2147483648
        %v1937 = vsel %vm1935, %v1936, %v1934
        %v1938 = vrsqrt.pop %v1508
        %v1939 = vmul.f32 %v1508, %v1938
        %vm1940 = vcmp.eq.f32.partialorder %v1508, inf
        %v1941 = vsel %vm1940, %v1508, %v1939
        %vm1942 = vcmp.eq.f32.partialorder %v1508, 0.0
        %v1943 = vand.u32 %v1508, 2147483648
        %v1944 = vsel %vm1942, %v1943, %v1941
        %v1945 = vrsqrt.pop %v1509
        %v1946 = vmul.f32 %v1509, %v1945
        %vm1947 = vcmp.eq.f32.partialorder %v1509, inf
        %v1948 = vsel %vm1947, %v1509, %v1946
        %vm1949 = vcmp.eq.f32.partialorder %v1509, 0.0
        %v1950 = vand.u32 %v1509, 2147483648
        %v1951 = vsel %vm1949, %v1950, %v1948
        %v1952 = vrsqrt.pop %v1510
        %v1953 = vmul.f32 %v1510, %v1952
        %vm1954 = vcmp.eq.f32.partialorder %v1510, inf
        %v1955 = vsel %vm1954, %v1510, %v1953
        %vm1956 = vcmp.eq.f32.partialorder %v1510, 0.0
        %v1957 = vand.u32 %v1510, 2147483648
        %v1958 = vsel %vm1956, %v1957, %v1955
        %1959 = vst [vmem:[%s321] sm:$0xff] %v1517
        %1960 = vst [vmem:[%s321 + $0x8] sm:$0xff] %v1524
        %1961 = vst [vmem:[%s321 + $0x10] sm:$0xff] %v1531
        %1962 = vst [vmem:[%s321 + $0x18] sm:$0xff] %v1538
        %1963 = vst [vmem:[%s321 + $0x20] sm:$0xff] %v1545
        %1964 = vst [vmem:[%s321 + $0x28] sm:$0xff] %v1552
        %1965 = vst [vmem:[%s321 + $0x30] sm:$0xff] %v1559
        %1966 = vst [vmem:[%s321 + $0x38] sm:$0xff] %v1566
        %1967 = vst [vmem:[%s321 + $0x40] sm:$0xff] %v1573
        %1968 = vst [vmem:[%s321 + $0x48] sm:$0xff] %v1580
        %1969 = vst [vmem:[%s321 + $0x50] sm:$0xff] %v1587
        %1970 = vst [vmem:[%s321 + $0x58] sm:$0xff] %v1594
        %1971 = vst [vmem:[%s321 + $0x60] sm:$0xff] %v1601
        %1972 = vst [vmem:[%s321 + $0x68] sm:$0xff] %v1608
        %1973 = vst [vmem:[%s321 + $0x70] sm:$0xff] %v1615
        %1974 = vst [vmem:[%s321 + $0x78] sm:$0xff] %v1622
        %1975 = vst [vmem:[%s321 + $0x80] sm:$0xff] %v1629
        %1976 = vst [vmem:[%s321 + $0x88] sm:$0xff] %v1636
        %1977 = vst [vmem:[%s321 + $0x90] sm:$0xff] %v1643
        %1978 = vst [vmem:[%s321 + $0x98] sm:$0xff] %v1650
        %1979 = vst [vmem:[%s321 + $0xa0] sm:$0xff] %v1657
        %1980 = vst [vmem:[%s321 + $0xa8] sm:$0xff] %v1664
        %1981 = vst [vmem:[%s321 + $0xb0] sm:$0xff] %v1671
        %1982 = vst [vmem:[%s321 + $0xb8] sm:$0xff] %v1678
        %1983 = vst [vmem:[%s321 + $0xc0] sm:$0xff] %v1685
        %1984 = vst [vmem:[%s321 + $0xc8] sm:$0xff] %v1692
        %1985 = vst [vmem:[%s321 + $0xd0] sm:$0xff] %v1699
        %1986 = vst [vmem:[%s321 + $0xd8] sm:$0xff] %v1706
        %1987 = vst [vmem:[%s321 + $0xe0] sm:$0xff] %v1713
        %1988 = vst [vmem:[%s321 + $0xe8] sm:$0xff] %v1720
        %1989 = vst [vmem:[%s321 + $0xf0] sm:$0xff] %v1727
        %1990 = vst [vmem:[%s321 + $0xf8] sm:$0xff] %v1734
        %1991 = vst [vmem:[%s321 + $0x100] sm:$0xff] %v1741
        %1992 = vst [vmem:[%s321 + $0x108] sm:$0xff] %v1748
        %1993 = vst [vmem:[%s321 + $0x110] sm:$0xff] %v1755
        %1994 = vst [vmem:[%s321 + $0x118] sm:$0xff] %v1762
        %1995 = vst [vmem:[%s321 + $0x120] sm:$0xff] %v1769
        %1996 = vst [vmem:[%s321 + $0x128] sm:$0xff] %v1776
        %1997 = vst [vmem:[%s321 + $0x130] sm:$0xff] %v1783
        %1998 = vst [vmem:[%s321 + $0x138] sm:$0xff] %v1790
        %1999 = vst [vmem:[%s321 + $0x140] sm:$0xff] %v1797
        %2000 = vst [vmem:[%s321 + $0x148] sm:$0xff] %v1804
        %2001 = vst [vmem:[%s321 + $0x150] sm:$0xff] %v1811
        %2002 = vst [vmem:[%s321 + $0x158] sm:$0xff] %v1818
        %2003 = vst [vmem:[%s321 + $0x160] sm:$0xff] %v1825
        %2004 = vst [vmem:[%s321 + $0x168] sm:$0xff] %v1832
        %2005 = vst [vmem:[%s321 + $0x170] sm:$0xff] %v1839
        %2006 = vst [vmem:[%s321 + $0x178] sm:$0xff] %v1846
        %2007 = vst [vmem:[%s321 + $0x180] sm:$0xff] %v1853
        %2008 = vst [vmem:[%s321 + $0x188] sm:$0xff] %v1860
        %2009 = vst [vmem:[%s321 + $0x190] sm:$0xff] %v1867
        %2010 = vst [vmem:[%s321 + $0x198] sm:$0xff] %v1874
        %2011 = vst [vmem:[%s321 + $0x1a0] sm:$0xff] %v1881
        %2012 = vst [vmem:[%s321 + $0x1a8] sm:$0xff] %v1888
        %2013 = vst [vmem:[%s321 + $0x1b0] sm:$0xff] %v1895
        %2014 = vst [vmem:[%s321 + $0x1b8] sm:$0xff] %v1902
        %2015 = vst [vmem:[%s321 + $0x1c0] sm:$0xff] %v1909
        %2016 = vst [vmem:[%s321 + $0x1c8] sm:$0xff] %v1916
        %2017 = vst [vmem:[%s321 + $0x1d0] sm:$0xff] %v1923
        %2018 = vst [vmem:[%s321 + $0x1d8] sm:$0xff] %v1930
        %2019 = vst [vmem:[%s321 + $0x1e0] sm:$0xff] %v1937
        %2020 = vst [vmem:[%s321 + $0x1e8] sm:$0xff] %v1944
        %2021 = vst [vmem:[%s321 + $0x1f0] sm:$0xff] %v1951
        %2022 = vst [vmem:[%s321 + $0x1f8] sm:$0xff] %v1958
        %s2023 = sand.u32 %s165, 1
        %s2024 = scalar_lea.sflag [#allocation4], %s2023
        %s2025 = sand.u32 %s165, 1
        %s2026 = smul.addr %s2025, 512
        %s2027 = scalar_lea.vmem [#allocation7], %s2026
        // Predicated region
        $region45: #{tpu_custom_call.1} parent=35 // pred_check
          %p2028 = pneg %p175
        $region46: #{tpu_custom_call.1} parent=35 // pred_check_branch
          %2030 = sbr.rel (%p2028) target = $region48
        $region47: #{tpu_custom_call.1} parent=35 // pred_region
          %s2031 = smul.u32 32, %s28
          %s2032 = smul.u32 2, %s29
          %s2034 = ssub.s32 8192, 8192
          %2035 = vsyncadd %s2024, %s2034
          %s2036 = smul.addr %s2031, 4
          %s2037 = sadd.s32 %s2032, %s2036
          %s2038 = smul.addr %s27, 128
          %s2039 = sadd.s32 %s2037, %s2038
          %s2040 = smul.addr %s2039, 128
          %s2041 = scalar_lea.hbm %s4, %s2040
          %s2042 = sshll.u32 %s2027, 4
          %s2043 = int_to_ptr.vmem [resolvable:$true] %s2042
          %2048 = dma.vmem_to_hbm [thread:$0]  %s2043, 8192, %s2041, %s2024, 256, 512, 16
        $region48: #{tpu_custom_call.1} parent=35 // pred_fallthru
          _
      $region36: #{tpu_custom_call.1} parent=5 // pred_fallthru
        _
      %p2049 = scmp.le.s32.totalorder 2, %s17
      // Predicated region
      $region49: #{tpu_custom_call.1} parent=5 // pred_check
        %p2050 = pneg %p2049
      $region50: #{tpu_custom_call.1} parent=5 // pred_check_branch
        %2052 = sbr.rel (%p2050) target = $region52
      $region51: #{tpu_custom_call.1} parent=5 // pred_region
        %s2053 = ssub.s32 %s17, 2
        // Predicated region
        $region53: #{tpu_custom_call.1} parent=51 // pred_check
          %p2054 = pneg %p181
        $region54: #{tpu_custom_call.1} parent=51 // pred_check_branch
          %2056 = sbr.rel (%p2054) target = $region56
        $region55: #{tpu_custom_call.1} parent=51 // pred_region
          %s2057 = sand.u32 %s166, 1
          %s2058 = scalar_lea.sflag [#allocation4], %s2057
          %s2059 = sand.u32 %s166, 1
          %s2060 = smul.addr %s2059, 512
          %s2061 = scalar_lea.vmem [#allocation7], %s2060
          %2062 = dma.done %s2058, 8192
        $region56: #{tpu_custom_call.1} parent=51 // pred_fallthru
          _
      $region52: #{tpu_custom_call.1} parent=5 // pred_fallthru
        _
    $region6: #{tpu_custom_call.1} parent=1 // loop_footer
      %s21 = sadd.s32 1, %s17
    $region7: #{tpu_custom_call.1} parent=1 // loop_footer_branch
      %16 = sbr.rel target = $region3
    $region8: #{tpu_custom_call.1} parent=1 // loop_exit
      _
    %2063 = vsyncpa [#allocation3], 1
    %s2064 = scalar_lea.sflag [#allocation3], 1
    %2065 = vsyncpa %s2064, 1
    %2066 = vsyncpa [#allocation6], 1
    %s2067 = scalar_lea.sflag [#allocation6], 1
    %2068 = vsyncpa %s2067, 1
    %2069 = vsyncpa [#allocation4], 1
    %s2070 = scalar_lea.sflag [#allocation4], 1
    %2071 = vsyncpa %s2070, 1

</llo_original>
